<compile_context>
chip_gen: v7x
topology: tpu7x:2x2x1
jax: 0.10.0
libtpu: 0.0.40
codegen_flags: <defaults>
</compile_context>

<pallas_src>
import jax
import jax.numpy as jnp
from jax.experimental import pallas as pl
from jax.experimental.pallas import tpu as pltpu

_LANE = 128
_TINY_PROBLEM_ELEMS = 1 << 21     # B * emb_p * hid_p below this -> plain XLA


def _round_up(n, m):
    return ((n + m - 1) // m) * m


def _vmem_budget_and_limit():
    """Generation-aware scoped-VMEM budget (tile picking) and explicit
    vmem_limit_bytes (compiler).  ~45 MiB / 54 MiB on v7x (64 MiB VMEM),
    ~90 MiB / 109 MiB on v5e/v6e (128 MiB VMEM)."""
    cap = 64 * 1024 * 1024                       # conservative default (v7x/TC)
    try:
        cap = int(pltpu.get_tpu_info().vmem_capacity_bytes)
    except Exception:                            # query unavailable -> default
        pass
    budget = int(cap * 0.70)
    limit = min(int(cap * 0.85), cap - (4 << 20))
    return budget, limit


def _probe_pipeline_mode():
    """One-time capability probe: does BlockSpec accept pipeline_mode=?
    TypeError-only, so genuine kernel failures are never masked."""
    if not hasattr(pl, "Buffered"):
        return False
    try:
        pl.BlockSpec((8, 128), lambda i: (0, 0), pipeline_mode=pl.Buffered(1))
    except TypeError:
        return False
    return True


_HAS_PIPELINE_MODE = _probe_pipeline_mode()


# ---------------------------------------------------------------------------
# Kernel
# ---------------------------------------------------------------------------
def itc_kernel(x_ref, w1_ref, b1_ref, w3_ref, b3_ref, o_ref, acc_ref):
    k = pl.program_id(1)

    @pl.when(k == 0)
    def _():
        acc_ref[...] = jnp.zeros_like(acc_ref)

    # f32 operands -> exact multi-pass MXU; bf16 operands -> native single pass.
    precision = (jax.lax.Precision.HIGHEST
                 if x_ref.dtype == jnp.float32 else None)

    # Linear 1 restricted to this hid tile (full emb contraction) + bias + ReLU
    # in f32.  Exact because each hid column lives entirely in one tile.
    h = jnp.dot(x_ref[...], w1_ref[...],
                preferred_element_type=jnp.float32, precision=precision)
    h = jnp.maximum(h + b1_ref[...], 0.0)                  # (bm,bh) + (1,bh)

    # Partial Linear 3 contribution of this hid tile, accumulated in f32.
    acc_ref[...] += jnp.dot(h.astype(w3_ref.dtype), w3_ref[...],
                            preferred_element_type=jnp.float32,
                            precision=precision)

    @pl.when(k == pl.num_programs(1) - 1)
    def _():
        o = jnp.maximum(acc_ref[...] + b3_ref[...], 0.0)   # (bm,emb) + (1,emb)
        o_ref[...] = o.astype(o_ref.dtype)


# ---------------------------------------------------------------------------
# Tile selection + pallas_call wrapper
# ---------------------------------------------------------------------------
def _pick_tiles(B, emb_p, hid_p, mxu_bytes, out_bytes, vmem_budget):
    """Largest (block_m, block_h) whose VMEM footprint (weights double-
    buffered per hid step, x/out double-buffered, f32 acc + h intermediates)
    fits ~80% of the scoped budget.  Batch tile is preferred over hid tile:
    it keeps the MXU fed and output stores lane-dense."""
    budget = int(0.8 * vmem_budget)
    row_align = 16 if mxu_bytes < 4 else 8
    b_al = _round_up(max(B, 1), row_align)

    bm_cands = sorted({min(c, b_al) for c in (1024, 512, 256, 128, 64, 32, 16, 8)}
                      | {b_al}, reverse=True)
    bm_cands = [c for c in bm_cands if c % row_align == 0]
    bh_cands = sorted({min(c, hid_p) for c in (4096, 2048, 1024, 512, 256, 128)}
                      | {hid_p}, reverse=True)
    bh_cands = [c for c in bh_cands if hid_p % c == 0]

    def fits(bm, bh):
        w_bytes = (2 * 2 * emb_p * bh * mxu_bytes   # W1 + W3 tiles, double-buf
                   + 2 * bh * 4                     # b1 tile, double-buffered
                   + 2 * emb_p * 4)                 # b3
        act_bytes = (2 * bm * emb_p * mxu_bytes     # x tile, double-buffered
                     + 2 * bm * emb_p * out_bytes   # out tile, double-buffered
                     + bm * emb_p * 4               # f32 accumulator scratch
                     + bm * bh * (4 + mxu_bytes))   # f32 h + its MXU-dtype cast
        return w_bytes + act_bytes <= budget

    for bm in bm_cands:
        for bh in bh_cands:
            if fits(bm, bh):
                return bm, bh
    return (bm_cands[-1] if bm_cands else row_align,
            bh_cands[-1] if bh_cands else _LANE)


def _call_pallas(x_p, w1_p, b1_p, w3_p, b3_p, *, out_dtype, block_m, block_h,
                 vmem_limit, cost):
    B_pad, emb_p = x_p.shape
    hid_p = w1_p.shape[1]
    assert B_pad % block_m == 0 and hid_p % block_h == 0
    assert emb_p % _LANE == 0 and block_h % _LANE == 0
    grid = (B_pad // block_m, hid_p // block_h)
    grid_h = grid[1]

    def spec(shape, index_map, constant):
        # Truly constant blocks only need one VMEM buffer.
        if constant and _HAS_PIPELINE_MODE:
            return pl.BlockSpec(shape, index_map, pipeline_mode=pl.Buffered(1))
        return pl.BlockSpec(shape, index_map)

    return pl.pallas_call(
        itc_kernel,
        out_shape=jax.ShapeDtypeStruct((B_pad, emb_p), out_dtype),
        grid_spec=pltpu.PrefetchScalarGridSpec(
            num_scalar_prefetch=0,
            grid=grid,
            in_specs=[
                pl.BlockSpec((block_m, emb_p), lambda i, k: (i, 0)),       # x
                spec((emb_p, block_h), lambda i, k: (0, k), grid_h == 1),  # W1
                spec((1, block_h), lambda i, k: (0, k), grid_h == 1),      # b1
                spec((block_h, emb_p), lambda i, k: (k, 0), grid_h == 1),  # W3
                spec((1, emb_p), lambda i, k: (0, 0), True),               # b3
            ],
            out_specs=pl.BlockSpec((block_m, emb_p), lambda i, k: (i, 0)),
            scratch_shapes=[pltpu.VMEM((block_m, emb_p), jnp.float32)],
        ),
        compiler_params=pltpu.CompilerParams(
            dimension_semantics=("parallel", "arbitrary"),
            vmem_limit_bytes=vmem_limit,
        ),
        cost_estimate=cost,
    )(x_p, w1_p, b1_p, w3_p, b3_p)


# ---------------------------------------------------------------------------
# Public API
# ---------------------------------------------------------------------------
def prepare_itc_params(w1, b1, w3, b3, *, mxu_dtype=jnp.bfloat16):
    """One-time weight preparation (hoisted out of the hot path).

    w1: (emb, hid) = torch l1.weight.T,   b1: (hid,)
    w3: (hid, emb) = torch l3.weight.T,   b3: (emb,)
    Weights are cast to mxu_dtype (bf16 default: fast MXU operand type on
    v5e/v6e/v7x) and zero-padded to lane (128) multiples; biases stay f32.
    Zero padding is exact: padded columns/rows contribute 0 and are sliced off.
    """
    emb, hid = w1.shape
    assert w3.shape == (hid, emb) and b1.shape == (hid,) and b3.shape == (emb,)
    emb_p, hid_p = _round_up(emb, _LANE), _round_up(hid, _LANE)
    mxu_dtype = jnp.dtype(mxu_dtype)
    w1_p = jnp.zeros((emb_p, hid_p), mxu_dtype).at[:emb, :hid].set(
        w1.astype(mxu_dtype))
    w3_p = jnp.zeros((hid_p, emb_p), mxu_dtype).at[:hid, :emb].set(
        w3.astype(mxu_dtype))
    b1_p = jnp.zeros((1, hid_p), jnp.float32).at[0, :hid].set(
        b1.astype(jnp.float32))
    b3_p = jnp.zeros((1, emb_p), jnp.float32).at[0, :emb].set(
        b3.astype(jnp.float32))
    return {"w1_p": w1_p, "b1_p": b1_p, "w3_p": w3_p, "b3_p": b3_p,
            "emb": emb, "hid": hid, "emb_p": emb_p, "hid_p": hid_p,
            "mxu_dtype": mxu_dtype}


def itc_net_forward(x, prepped, *, out_dtype=None, block_m=None, block_h=None,
                    use_pallas=None):
    """relu(relu(x @ W1 + b1) @ W3 + b3) with prepared (padded) weights.

    use_pallas: None = auto (tiny problems use plain XLA), True/False = force.
    """
    B, emb = x.shape
    assert emb == prepped["emb"]
    emb_p, hid_p = prepped["emb_p"], prepped["hid_p"]
    mxu_dtype = prepped["mxu_dtype"]
    out_dtype = jnp.dtype(x.dtype if out_dtype is None else out_dtype)

    if use_pallas is None:
        use_pallas = B * emb_p * hid_p >= _TINY_PROBLEM_ELEMS
    if not use_pallas:
        # Sub-tile problems: per-grid-step + padding overhead dominates; a
        # fused XLA matmul pair is faster than any Pallas launch.
        hid = prepped["hid"]
        h = jnp.maximum(
            jnp.dot(x.astype(mxu_dtype), prepped["w1_p"][:emb, :hid],
                    preferred_element_type=jnp.float32)
            + prepped["b1_p"][0, :hid], 0.0)
        o = jnp.maximum(
            jnp.dot(h.astype(mxu_dtype), prepped["w3_p"][:hid, :emb],
                    preferred_element_type=jnp.float32)
            + prepped["b3_p"][0, :emb], 0.0)
        return o.astype(out_dtype)

    mxu_bytes = mxu_dtype.itemsize
    out_bytes = out_dtype.itemsize
    budget, limit = _vmem_budget_and_limit()
    bm_auto, bh_auto = _pick_tiles(B, emb_p, hid_p, mxu_bytes, out_bytes, budget)
    block_m = bm_auto if block_m is None else block_m
    block_h = bh_auto if block_h is None else block_h
    B_pad = _round_up(B, block_m)

    # Pad/cast x only when actually required.
    if B_pad == B and emb_p == emb and x.dtype == mxu_dtype:
        x_p = x
    else:
        x_p = jnp.zeros((B_pad, emb_p), mxu_dtype).at[:B, :emb].set(
            x.astype(mxu_dtype))

    cost = pl.CostEstimate(
        flops=2 * B_pad * (emb_p * hid_p + hid_p * emb_p),
        transcendentals=0,
        bytes_accessed=(x_p.size * mxu_bytes
                        + 2 * emb_p * hid_p * mxu_bytes
                        + (hid_p + emb_p) * 4
                        + B_pad * emb_p * out_bytes),
    )

    out_p = _call_pallas(x_p, prepped["w1_p"], prepped["b1_p"],
                         prepped["w3_p"], prepped["b3_p"],
                         out_dtype=out_dtype, block_m=block_m, block_h=block_h,
                         vmem_limit=limit, cost=cost)
    if B_pad != B or emb_p != emb:
        out_p = out_p[:B, :emb]
    return out_p


# ---------------------------------------------------------------------------
# Reference / demo
# ---------------------------------------------------------------------------
def init_params(key, emb_dim, hid_dim, dtype=jnp.float32):
    """Synthetic params matching the torch module's nn.Linear shapes
    (torch stores weight as (out, in); transpose when preparing the kernel)."""
    k1, k2, k3, k4, k5, k6 = jax.random.split(key, 6)
    s1 = 1.0 / jnp.sqrt(emb_dim)
    s3 = 1.0 / jnp.sqrt(hid_dim)
    return {
        "l1_w": jax.random.uniform(k1, (hid_dim, emb_dim), dtype, -s1, s1),
        "l1_b": jax.random.uniform(k2, (hid_dim,), dtype, -s1, s1),
        # l2 exists in __init__ but is unused in forward; kept for fidelity.
        "l2_w": jax.random.uniform(k3, (hid_dim, emb_dim), dtype, -s1, s1),
        "l2_b": jax.random.uniform(k4, (hid_dim,), dtype, -s1, s1),
        "l3_w": jax.random.uniform(k5, (emb_dim, hid_dim), dtype, -s3, s3),
        "l3_b": jax.random.uniform(k6, (emb_dim,), dtype, -s3, s3),
    }


def reference_forward(x, params):
    h = jnp.maximum(
        jnp.dot(x, params["l1_w"].T, precision=jax.lax.Precision.HIGHEST)
        + params["l1_b"], 0.0)
    return jnp.maximum(
        jnp.dot(h, params["l3_w"].T, precision=jax.lax.Precision.HIGHEST)
        + params["l3_b"], 0.0)


if __name__ == "__main__":
    key = jax.random.PRNGKey(0)
    kp, kx, kp2, kx2 = jax.random.split(key, 4)

    # --- Case 1: small shapes, single hid tile ------------------------------
    emb_dim, hid_dim, batch = 32, 64, 8
    params = init_params(kp, emb_dim, hid_dim)
    x = jax.random.normal(kx, (batch, emb_dim), jnp.float32)
    ref = reference_forward(x, params)

    # f32 MXU operands: tight correctness check.
    prepped_f32 = prepare_itc_params(params["l1_w"].T, params["l1_b"],
                                     params["l3_w"].T, params["l3_b"],
                                     mxu_dtype=jnp.float32)
    out_f32 = jax.block_until_ready(
        itc_net_forward(x, prepped_f32, use_pallas=True))
    assert out_f32.shape == (batch, emb_dim)
    assert jnp.allclose(out_f32, ref, atol=1e-4, rtol=1e-4), "f32 mismatch"

    # bf16 MXU operands (f32 accumulation) -- the production path.
    prepped_bf16 = prepare_itc_params(params["l1_w"].T, params["l1_b"],
                                      params["l3_w"].T, params["l3_b"])
    out_bf16 = jax.block_until_ready(
        itc_net_forward(x, prepped_bf16, use_pallas=True))
    assert out_bf16.shape == (batch, emb_dim)
    assert jnp.allclose(out_bf16, ref, atol=2e-2, rtol=2e-2), "bf16 mismatch"

    # Auto gate: this problem is tiny, so it takes the plain XLA path.
    out_auto = jax.block_until_ready(itc_net_forward(x, prepped_bf16))
    assert jnp.allclose(out_auto, ref, atol=2e-2, rtol=2e-2), "auto mismatch"

    # --- Case 2: non-aligned dims; exercises batch + hid (reduction) tiling --
    emb_dim2, hid_dim2, batch2 = 96, 200, 40
    params2 = init_params(kp2, emb_dim2, hid_dim2)
    x2 = jax.random.normal(kx2, (batch2, emb_dim2), jnp.float32)
    ref2 = reference_forward(x2, params2)
    prepped2 = prepare_itc_params(params2["l1_w"].T, params2["l1_b"],
                                  params2["l3_w"].T, params2["l3_b"],
                                  mxu_dtype=jnp.float32)
    out2 = jax.block_until_ready(
        itc_net_forward(x2, prepped2, use_pallas=True,
                        block_m=16, block_h=128))      # grid = (3, 2)
    assert out2.shape == (batch2, emb_dim2)
    assert jnp.allclose(out2, ref2, atol=1e-4, rtol=1e-4), "tiled mismatch"

    print("KERNEL_OK")
</pallas_src>

<mosaic_0001>
module attributes {stable_mosaic.version = 11 : i64} {
  func.func @itc_kernel(%arg0: i32, %arg1: i32, %arg2: memref<8x128xf32, #tpu.memory_space<vmem>>, %arg3: memref<128x128xf32, #tpu.memory_space<vmem>>, %arg4: memref<1x128xf32, #tpu.memory_space<vmem>>, %arg5: memref<128x128xf32, #tpu.memory_space<vmem>>, %arg6: memref<1x128xf32, #tpu.memory_space<vmem>>, %arg7: memref<8x128xf32, #tpu.memory_space<vmem>>, %arg8: memref<8x128xf32, #tpu.memory_space<vmem>>) attributes {dimension_semantics = [#tpu.dimension_semantics<parallel>, #tpu.dimension_semantics<arbitrary>], iteration_bounds = array<i64: 1, 1>, scalar_prefetch = 0 : i64, scratch_operands = 1 : i64, tpu.core_type = #tpu.core_type<tc>, window_params = [{transform_indices = @transform_0, window_bounds = array<i64: 8, 128>}, {pipeline_mode = #tpu.pipeline_mode<synchronous>, transform_indices = @transform_1, window_bounds = array<i64: 128, 128>}, {pipeline_mode = #tpu.pipeline_mode<synchronous>, transform_indices = @transform_2, window_bounds = array<i64: 1, 128>}, {pipeline_mode = #tpu.pipeline_mode<synchronous>, transform_indices = @transform_3, window_bounds = array<i64: 128, 128>}, {pipeline_mode = #tpu.pipeline_mode<synchronous>, transform_indices = @transform_4, window_bounds = array<i64: 1, 128>}, {transform_indices = @transform_5, window_bounds = array<i64: 8, 128>}]} {
    %c0_i32 = arith.constant 0 : i32
    %0 = arith.cmpi eq, %arg1, %c0_i32 : i32
    %1 = arith.extui %0 : i1 to i32
    %c0_i32_0 = arith.constant 0 : i32
    %2 = arith.cmpi ne, %1, %c0_i32_0 : i32
    scf.if %2 {
      %cst_16 = arith.constant 0.000000e+00 : f32
      %19 = vector.broadcast %cst_16 : f32 to vector<8x128xf32>
      %c0_17 = arith.constant 0 : index
      %c0_18 = arith.constant 0 : index
      %20 = vector.load %arg8[%c0_17, %c0_18] : memref<8x128xf32, #tpu.memory_space<vmem>>, vector<8x128xf32>
      tpu.vector_store %arg8[%c0_17, %c0_18], %19 {strides = array<i32>} : memref<8x128xf32, #tpu.memory_space<vmem>>, vector<8x128xf32>,
    } else {
    }
    %c0 = arith.constant 0 : index
    %c0_1 = arith.constant 0 : index
    %3 = vector.load %arg2[%c0, %c0_1] : memref<8x128xf32, #tpu.memory_space<vmem>>, vector<8x128xf32>
    %c0_2 = arith.constant 0 : index
    %c0_3 = arith.constant 0 : index
    %4 = vector.load %arg3[%c0_2, %c0_3] : memref<128x128xf32, #tpu.memory_space<vmem>>, vector<128x128xf32>
    %cst = arith.constant dense<0.000000e+00> : vector<8x128xf32>
    %5 = tpu.matmul %3, %4, %cst {dimension_numbers = #tpu.dot_dimension_numbers<[1], [0], [0], [1], [0, 0, 1, 1], [], []>, precision = #tpu.contract_precision<fp32>} : vector<8x128xf32>, vector<128x128xf32>, vector<8x128xf32> -> vector<8x128xf32>
    %c0_4 = arith.constant 0 : index
    %c0_5 = arith.constant 0 : index
    %6 = vector.load %arg4[%c0_4, %c0_5] : memref<1x128xf32, #tpu.memory_space<vmem>>, vector<1x128xf32>
    %7 = vector.broadcast %6 : vector<1x128xf32> to vector<8x128xf32>
    %8 = arith.addf %5, %7 : vector<8x128xf32>
    %cst_6 = arith.constant 0.000000e+00 : f32
    %9 = vector.broadcast %cst_6 : f32 to vector<8x128xf32>
    %10 = arith.maximumf %8, %9 : vector<8x128xf32>
    %c0_7 = arith.constant 0 : index
    %c0_8 = arith.constant 0 : index
    %11 = vector.load %arg8[%c0_7, %c0_8] : memref<8x128xf32, #tpu.memory_space<vmem>>, vector<8x128xf32>
    %c0_9 = arith.constant 0 : index
    %c0_10 = arith.constant 0 : index
    %12 = vector.load %arg5[%c0_9, %c0_10] : memref<128x128xf32, #tpu.memory_space<vmem>>, vector<128x128xf32>
    %cst_11 = arith.constant dense<0.000000e+00> : vector<8x128xf32>
    %13 = tpu.matmul %10, %12, %cst_11 {dimension_numbers = #tpu.dot_dimension_numbers<[1], [0], [0], [1], [0, 0, 1, 1], [], []>, precision = #tpu.contract_precision<fp32>} : vector<8x128xf32>, vector<128x128xf32>, vector<8x128xf32> -> vector<8x128xf32>
    %14 = arith.addf %11, %13 : vector<8x128xf32>
    %c0_12 = arith.constant 0 : index
    %c0_13 = arith.constant 0 : index
    %15 = vector.load %arg8[%c0_12, %c0_13] : memref<8x128xf32, #tpu.memory_space<vmem>>, vector<8x128xf32>
    tpu.vector_store %arg8[%c0_12, %c0_13], %14 {strides = array<i32>} : memref<8x128xf32, #tpu.memory_space<vmem>>, vector<8x128xf32>,
    %c0_i32_14 = arith.constant 0 : i32
    %16 = arith.cmpi eq, %arg1, %c0_i32_14 : i32
    %17 = arith.extui %16 : i1 to i32
    %c0_i32_15 = arith.constant 0 : i32
    %18 = arith.cmpi ne, %17, %c0_i32_15 : i32
    scf.if %18 {
      %c0_16 = arith.constant 0 : index
      %c0_17 = arith.constant 0 : index
      %19 = vector.load %arg8[%c0_16, %c0_17] : memref<8x128xf32, #tpu.memory_space<vmem>>, vector<8x128xf32>
      %c0_18 = arith.constant 0 : index
      %c0_19 = arith.constant 0 : index
      %20 = vector.load %arg6[%c0_18, %c0_19] : memref<1x128xf32, #tpu.memory_space<vmem>>, vector<1x128xf32>
      %21 = vector.broadcast %20 : vector<1x128xf32> to vector<8x128xf32>
      %22 = arith.addf %19, %21 : vector<8x128xf32>
      %cst_20 = arith.constant 0.000000e+00 : f32
      %23 = vector.broadcast %cst_20 : f32 to vector<8x128xf32>
      %24 = arith.maximumf %22, %23 : vector<8x128xf32>
      %c0_21 = arith.constant 0 : index
      %c0_22 = arith.constant 0 : index
      %25 = vector.load %arg7[%c0_21, %c0_22] : memref<8x128xf32, #tpu.memory_space<vmem>>, vector<8x128xf32>
      tpu.vector_store %arg7[%c0_21, %c0_22], %24 {strides = array<i32>} : memref<8x128xf32, #tpu.memory_space<vmem>>, vector<8x128xf32>,
    } else {
    }
    return
  }
  func.func @transform_0(%arg0: i32, %arg1: i32) -> (i32, i32) {
    %c0_i32 = arith.constant 0 : i32
    %c0_i32_0 = arith.constant 0 : i32
    return %arg0, %c0_i32 : i32, i32
  }
  func.func @transform_1(%arg0: i32, %arg1: i32) -> (i32, i32) {
    %c0_i32 = arith.constant 0 : i32
    %c0_i32_0 = arith.constant 0 : i32
    return %c0_i32, %arg1 : i32, i32
  }
  func.func @transform_2(%arg0: i32, %arg1: i32) -> (i32, i32) {
    %c0_i32 = arith.constant 0 : i32
    %c0_i32_0 = arith.constant 0 : i32
    return %c0_i32, %arg1 : i32, i32
  }
  func.func @transform_3(%arg0: i32, %arg1: i32) -> (i32, i32) {
    %c0_i32 = arith.constant 0 : i32
    %c0_i32_0 = arith.constant 0 : i32
    return %arg1, %c0_i32 : i32, i32
  }
  func.func @transform_4(%arg0: i32, %arg1: i32) -> (i32, i32) {
    %c0_i32 = arith.constant 0 : i32
    %c0_i32_0 = arith.constant 0 : i32
    %c0_i32_1 = arith.constant 0 : i32
    return %c0_i32, %c0_i32_0 : i32, i32
  }
  func.func @transform_5(%arg0: i32, %arg1: i32) -> (i32, i32) {
    %c0_i32 = arith.constant 0 : i32
    %c0_i32_0 = arith.constant 0 : i32
    return %arg0, %c0_i32 : i32, i32
  }
}

</mosaic_0001>

<llo_original>
// kernel: tpu_custom_call.1
$region0: #{tpu_custom_call.1}
  #allocation0 [shape = 'u32[]', space=smem, size = 0x4, offset = 0x4, fixed_abs, tag = 'smem constant byte address 0x4 - core index']
  #allocation1 [shape = 'u32[144,128]{1,0:T(1,128)}', space=vmem, size = 0x12000, scoped, tag = 'internal scratch']
  #allocation2 [shape = 'f32[8,128]{1,0:T(8,128)}', space=vmem, size = 0x1000, scoped, tag = 'scratch operand']
  %s0 = inlined_call_operand.hbm [shape: f32[8,128], index: 0, kind: input, shape index: {}]
  %s1 = inlined_call_operand.hbm [shape: f32[128,128], index: 1, kind: input, shape index: {}]
  %s2 = inlined_call_operand.vmem [shape: f32[1,128], index: 2, kind: input, shape index: {}]
  %s3 = inlined_call_operand.hbm [shape: f32[128,128], index: 3, kind: input, shape index: {}]
  %s4 = inlined_call_operand.vmem [shape: f32[1,128], index: 4, kind: input, shape index: {}]
  %s5 = inlined_call_operand.hbm [shape: f32[8,128], index: 5, kind: output, shape index: {}]
  %s6 = sld [smem:[#allocation0]]
  $region50: #{tpu_custom_call.1} parent=0
    _
  %s8 = ssub.s32 1, %s6
  %s9 = scalar_select 0, %s8, %s6
  $region1: #{tpu_custom_call.1} parent=0
    #allocation3 [shape = 'u8[4096]{0}', space=vmem, size = 0x1000, scoped, tag = 'input window, operand 0, single buffered']
    #allocation4 [shape = 's32[1]{0}', space=sflag, size = 0x4, scoped, tag = 'scoped memory for tpu_custom_call.1']
    #allocation5 [shape = 's32[1]{0}', space=sflag, size = 0x4, scoped, tag = 'scoped memory for tpu_custom_call.1']
    #allocation6 [shape = 'u8[65536]{0}', space=vmem, size = 0x10000, scoped, tag = 'input window, operand 1, single buffered']
    #allocation7 [shape = 's32[1]{0}', space=sflag, size = 0x4, scoped, tag = 'scoped memory for tpu_custom_call.1']
    #allocation8 [shape = 'u8[65536]{0}', space=vmem, size = 0x10000, scoped, tag = 'input window, operand 3, single buffered']
    #allocation9 [shape = 'u8[4096]{0}', space=vmem, size = 0x1000, scoped, tag = 'output window, operand 0, single buffered']
    %10 = vsyncpa [#allocation4], 0
    %11 = vsyncpa [#allocation7], 0
    %12 = vsyncpa [#allocation5], 0
    // Predicated region
    $region2: #{tpu_custom_call.1} parent=1 // pred_check
      _
    $region3: #{tpu_custom_call.1} parent=1 // pred_check_branch
      %14 = sbr.rel (0) target = $region5
    $region4: #{tpu_custom_call.1} parent=1 // pred_region
      %s16 = ssub.s32 128, 128
      %17 = vsyncadd [#allocation4], %s16
      %s19 = sshll.u32 [#allocation3], 4
      %s20 = int_to_ptr.vmem [resolvable:$true] %s19
      %22 = dma.hbm_to_vmem [thread:$0]  %s0, 128, %s20, [#allocation4]
    $region5: #{tpu_custom_call.1} parent=1 // pred_fallthru
      _
    // Predicated region
    $region6: #{tpu_custom_call.1} parent=1 // pred_check
      _
    $region7: #{tpu_custom_call.1} parent=1 // pred_check_branch
      %24 = sbr.rel (0) target = $region9
    $region8: #{tpu_custom_call.1} parent=1 // pred_region
      %s26 = ssub.s32 2048, 2048
      %27 = vsyncadd [#allocation7], %s26
      %s28 = sshll.u32 [#allocation6], 4
      %s29 = int_to_ptr.vmem [resolvable:$true] %s28
      %34 = dma.hbm_to_vmem [thread:$0]  %s1, 2048, %s29, [#allocation7], 128, 128, 8
    $region9: #{tpu_custom_call.1} parent=1 // pred_fallthru
      _
    // Predicated region
    $region10: #{tpu_custom_call.1} parent=1 // pred_check
      _
    $region11: #{tpu_custom_call.1} parent=1 // pred_check_branch
      %36 = sbr.rel (0) target = $region13
    $region12: #{tpu_custom_call.1} parent=1 // pred_region
      _
    $region13: #{tpu_custom_call.1} parent=1 // pred_fallthru
      _
    // Predicated region
    $region14: #{tpu_custom_call.1} parent=1 // pred_check
      _
    $region15: #{tpu_custom_call.1} parent=1 // pred_check_branch
      %38 = sbr.rel (0) target = $region17
    $region16: #{tpu_custom_call.1} parent=1 // pred_region
      %s40 = ssub.s32 2048, 2048
      %41 = vsyncadd [#allocation7], %s40
      %s42 = sshll.u32 [#allocation8], 4
      %s43 = int_to_ptr.vmem [resolvable:$true] %s42
      %48 = dma.hbm_to_vmem [thread:$0]  %s3, 2048, %s43, [#allocation7], 128, 128, 8
    $region17: #{tpu_custom_call.1} parent=1 // pred_fallthru
      _
    // Predicated region
    $region18: #{tpu_custom_call.1} parent=1 // pred_check
      _
    $region19: #{tpu_custom_call.1} parent=1 // pred_check_branch
      %50 = sbr.rel (0) target = $region21
    $region20: #{tpu_custom_call.1} parent=1 // pred_region
      _
    $region21: #{tpu_custom_call.1} parent=1 // pred_fallthru
      _
    // Predicated region
    $region22: #{tpu_custom_call.1} parent=1 // pred_check
      _
    $region23: #{tpu_custom_call.1} parent=1 // pred_check_branch
      %52 = sbr.rel (0) target = $region25
    $region24: #{tpu_custom_call.1} parent=1 // pred_region
      %53 = dma.done [#allocation4], 128
    $region25: #{tpu_custom_call.1} parent=1 // pred_fallthru
      _
    // Predicated region
    $region26: #{tpu_custom_call.1} parent=1 // pred_check
      _
    $region27: #{tpu_custom_call.1} parent=1 // pred_check_branch
      %55 = sbr.rel (0) target = $region29
    $region28: #{tpu_custom_call.1} parent=1 // pred_region
      %56 = dma.done [#allocation7], 2048
    $region29: #{tpu_custom_call.1} parent=1 // pred_fallthru
      _
    // Predicated region
    $region30: #{tpu_custom_call.1} parent=1 // pred_check
      _
    $region31: #{tpu_custom_call.1} parent=1 // pred_check_branch
      %58 = sbr.rel (0) target = $region33
    $region32: #{tpu_custom_call.1} parent=1 // pred_region
      %59 = dma.done [#allocation7], 2048
    $region33: #{tpu_custom_call.1} parent=1 // pred_fallthru
      _
    %p60 = scmp.eq.s32.totalorder 0, 0
    // Predicated region
    $region34: #{tpu_custom_call.1} parent=1 // pred_check
      %p61 = pneg %p60
    $region35: #{tpu_custom_call.1} parent=1 // pred_check_branch
      %63 = sbr.rel (%p61) target = $region37
    $region36: #{tpu_custom_call.1} parent=1 // pred_region
      %64 = vst [vmem:[#allocation2] sm:$0xff] 0.0
    $region37: #{tpu_custom_call.1} parent=1 // pred_fallthru
      _
    %v65 = vld [vmem:[#allocation3] sm:$0xff]
    %v66 = vld [vmem:[#allocation6] sm:$0xff]
    %v67 = vld [vmem:[#allocation6 + $0x8] sm:$0xff]
    %v68 = vld [vmem:[#allocation6 + $0x10] sm:$0xff]
    %v69 = vld [vmem:[#allocation6 + $0x18] sm:$0xff]
    %v70 = vld [vmem:[#allocation6 + $0x20] sm:$0xff]
    %v71 = vld [vmem:[#allocation6 + $0x28] sm:$0xff]
    %v72 = vld [vmem:[#allocation6 + $0x30] sm:$0xff]
    %v73 = vld [vmem:[#allocation6 + $0x38] sm:$0xff]
    %v74 = vld [vmem:[#allocation6 + $0x40] sm:$0xff]
    %v75 = vld [vmem:[#allocation6 + $0x48] sm:$0xff]
    %v76 = vld [vmem:[#allocation6 + $0x50] sm:$0xff]
    %v77 = vld [vmem:[#allocation6 + $0x58] sm:$0xff]
    %v78 = vld [vmem:[#allocation6 + $0x60] sm:$0xff]
    %v79 = vld [vmem:[#allocation6 + $0x68] sm:$0xff]
    %v80 = vld [vmem:[#allocation6 + $0x70] sm:$0xff]
    %v81 = vld [vmem:[#allocation6 + $0x78] sm:$0xff]
    %v82 = vld [vmem:[%s2] sm:$0x1]
    %v84 = vlaneseq
    %v85 = vshrl.u32 %v84, 7
    %v86 = vsub.s32 0, %v85
    %v87 = vrot.slane %v82, %v86
    %89 = vmatprep.subr.mxu0 0.0
    %v90 = vand.u32 %v66, 4294901760
    %91 = vmatpush1.msra.mxu0 %v90
    %92 = vmatprep.subr.mxu0 0.0
    %v93 = vand.u32 %v67, 4294901760
    %94 = vmatpush1.msra.mxu0 %v93
    %95 = vmatprep.subr.mxu0 0.0
    %v96 = vand.u32 %v68, 4294901760
    %97 = vmatpush1.msra.mxu0 %v96
    %98 = vmatprep.subr.mxu0 0.0
    %v99 = vand.u32 %v69, 4294901760
    %100 = vmatpush1.msra.mxu0 %v99
    %101 = vmatprep.subr.mxu0 0.0
    %v102 = vand.u32 %v70, 4294901760
    %103 = vmatpush1.msra.mxu0 %v102
    %104 = vmatprep.subr.mxu0 0.0
    %v105 = vand.u32 %v71, 4294901760
    %106 = vmatpush1.msra.mxu0 %v105
    %107 = vmatprep.subr.mxu0 0.0
    %v108 = vand.u32 %v72, 4294901760
    %109 = vmatpush1.msra.mxu0 %v108
    %110 = vmatprep.subr.mxu0 0.0
    %v111 = vand.u32 %v73, 4294901760
    %112 = vmatpush1.msra.mxu0 %v111
    %113 = vmatprep.subr.mxu0 0.0
    %v114 = vand.u32 %v74, 4294901760
    %115 = vmatpush1.msra.mxu0 %v114
    %116 = vmatprep.subr.mxu0 0.0
    %v117 = vand.u32 %v75, 4294901760
    %118 = vmatpush1.msra.mxu0 %v117
    %119 = vmatprep.subr.mxu0 0.0
    %v120 = vand.u32 %v76, 4294901760
    %121 = vmatpush1.msra.mxu0 %v120
    %122 = vmatprep.subr.mxu0 0.0
    %v123 = vand.u32 %v77, 4294901760
    %124 = vmatpush1.msra.mxu0 %v123
    %125 = vmatprep.subr.mxu0 0.0
    %v126 = vand.u32 %v78, 4294901760
    %127 = vmatpush1.msra.mxu0 %v126
    %128 = vmatprep.subr.mxu0 0.0
    %v129 = vand.u32 %v79, 4294901760
    %130 = vmatpush1.msra.mxu0 %v129
    %131 = vmatprep.subr.mxu0 0.0
    %v132 = vand.u32 %v80, 4294901760
    %133 = vmatpush1.msra.mxu0 %v132
    %134 = vmatprep.subr.mxu0 0.0
    %v135 = vand.u32 %v81, 4294901760
    %136 = vmatpush1.msra.mxu0 %v135
    %137 = vmatprep.subr.mxu0 0.0
    %138 = vmatpush1.msra.mxu0 0.0
    %139 = vmatprep.subr.mxu0 0.0
    %140 = vmatpush1.msra.mxu0 0.0
    %141 = vmatprep.subr.mxu0 0.0
    %142 = vmatpush1.msra.mxu0 0.0
    %143 = vmatprep.subr.mxu0 0.0
    %144 = vmatpush1.msra.mxu0 0.0
    %145 = vmatprep.subr.mxu0 0.0
    %146 = vmatpush1.msra.mxu0 0.0
    %147 = vmatprep.subr.mxu0 0.0
    %148 = vmatpush1.msra.mxu0 0.0
    %149 = vmatprep.subr.mxu0 0.0
    %150 = vmatpush1.msra.mxu0 0.0
    %151 = vmatprep.subr.mxu0 0.0
    %152 = vmatpush1.msra.mxu0 0.0
    %153 = vmatprep.subr.mxu0 0.0
    %154 = vmatpush1.msra.mxu0 0.0
    %155 = vmatprep.subr.mxu0 0.0
    %156 = vmatpush1.msra.mxu0 0.0
    %157 = vmatprep.subr.mxu0 0.0
    %158 = vmatpush1.msra.mxu0 0.0
    %159 = vmatprep.subr.mxu0 0.0
    %160 = vmatpush1.msra.mxu0 0.0
    %161 = vmatprep.subr.mxu0 0.0
    %162 = vmatpush1.msra.mxu0 0.0
    %163 = vmatprep.subr.mxu0 0.0
    %164 = vmatpush1.msra.mxu0 0.0
    %165 = vmatprep.subr.mxu0 0.0
    %166 = vmatpush1.msra.mxu0 0.0
    %167 = vmatprep.subr.mxu0 0.0
    %168 = vmatpush1.msra.mxu0 0.0
    %169 = vmatprep.mubr.f32.mxu0 0.0
    %v170 = vand.u32 %v65, 4294901760
    %v171 = vsub.f32 %v65, %v170
    %v172 = vand.u32 %v171, 4294901760
    %v173 = vsub.f32 %v171, %v172
    %v174 = vand.u32 %v173, 4294901760
    %175 = vmatmul.mubr.f32.gmra.mrb[0].mxu0 %v174
    %v176 = vpop.f32.mrb[0].mxu0
    %v177 = vadd.f32 %v87, %v176
    %v178 = vpop.f32.mrb[0].mxu0
    %179 = vdwg.mxu0
    %180 = vmatprep.subr.mxu0 0.0
    %v181 = vand.u32 %v66, 4294901760
    %v182 = vsub.f32 %v66, %v181
    %v183 = vand.u32 %v182, 4294901760
    %v184 = vsub.f32 %v182, %v183
    %v185 = vand.u32 %v184, 4294901760
    %186 = vmatpush1.msra.mxu0 %v185
    %187 = vmatprep.subr.mxu0 0.0
    %v188 = vand.u32 %v67, 4294901760
    %v189 = vsub.f32 %v67, %v188
    %v190 = vand.u32 %v189, 4294901760
    %v191 = vsub.f32 %v189, %v190
    %v192 = vand.u32 %v191, 4294901760
    %193 = vmatpush1.msra.mxu0 %v192
    %194 = vmatprep.subr.mxu0 0.0
    %v195 = vand.u32 %v68, 4294901760
    %v196 = vsub.f32 %v68, %v195
    %v197 = vand.u32 %v196, 4294901760
    %v198 = vsub.f32 %v196, %v197
    %v199 = vand.u32 %v198, 4294901760
    %200 = vmatpush1.msra.mxu0 %v199
    %201 = vmatprep.subr.mxu0 0.0
    %v202 = vand.u32 %v69, 4294901760
    %v203 = vsub.f32 %v69, %v202
    %v204 = vand.u32 %v203, 4294901760
    %v205 = vsub.f32 %v203, %v204
    %v206 = vand.u32 %v205, 4294901760
    %207 = vmatpush1.msra.mxu0 %v206
    %208 = vmatprep.subr.mxu0 0.0
    %v209 = vand.u32 %v70, 4294901760
    %v210 = vsub.f32 %v70, %v209
    %v211 = vand.u32 %v210, 4294901760
    %v212 = vsub.f32 %v210, %v211
    %v213 = vand.u32 %v212, 4294901760
    %214 = vmatpush1.msra.mxu0 %v213
    %215 = vmatprep.subr.mxu0 0.0
    %v216 = vand.u32 %v71, 4294901760
    %v217 = vsub.f32 %v71, %v216
    %v218 = vand.u32 %v217, 4294901760
    %v219 = vsub.f32 %v217, %v218
    %v220 = vand.u32 %v219, 4294901760
    %221 = vmatpush1.msra.mxu0 %v220
    %222 = vmatprep.subr.mxu0 0.0
    %v223 = vand.u32 %v72, 4294901760
    %v224 = vsub.f32 %v72, %v223
    %v225 = vand.u32 %v224, 4294901760
    %v226 = vsub.f32 %v224, %v225
    %v227 = vand.u32 %v226, 4294901760
    %228 = vmatpush1.msra.mxu0 %v227
    %229 = vmatprep.subr.mxu0 0.0
    %v230 = vand.u32 %v73, 4294901760
    %v231 = vsub.f32 %v73, %v230
    %v232 = vand.u32 %v231, 4294901760
    %v233 = vsub.f32 %v231, %v232
    %v234 = vand.u32 %v233, 4294901760
    %235 = vmatpush1.msra.mxu0 %v234
    %236 = vmatprep.subr.mxu0 0.0
    %v237 = vand.u32 %v74, 4294901760
    %v238 = vsub.f32 %v74, %v237
    %v239 = vand.u32 %v238, 4294901760
    %v240 = vsub.f32 %v238, %v239
    %v241 = vand.u32 %v240, 4294901760
    %242 = vmatpush1.msra.mxu0 %v241
    %243 = vmatprep.subr.mxu0 0.0
    %v244 = vand.u32 %v75, 4294901760
    %v245 = vsub.f32 %v75, %v244
    %v246 = vand.u32 %v245, 4294901760
    %v247 = vsub.f32 %v245, %v246
    %v248 = vand.u32 %v247, 4294901760
    %249 = vmatpush1.msra.mxu0 %v248
    %250 = vmatprep.subr.mxu0 0.0
    %v251 = vand.u32 %v76, 4294901760
    %v252 = vsub.f32 %v76, %v251
    %v253 = vand.u32 %v252, 4294901760
    %v254 = vsub.f32 %v252, %v253
    %v255 = vand.u32 %v254, 4294901760
    %256 = vmatpush1.msra.mxu0 %v255
    %257 = vmatprep.subr.mxu0 0.0
    %v258 = vand.u32 %v77, 4294901760
    %v259 = vsub.f32 %v77, %v258
    %v260 = vand.u32 %v259, 4294901760
    %v261 = vsub.f32 %v259, %v260
    %v262 = vand.u32 %v261, 4294901760
    %263 = vmatpush1.msra.mxu0 %v262
    %264 = vmatprep.subr.mxu0 0.0
    %v265 = vand.u32 %v78, 4294901760
    %v266 = vsub.f32 %v78, %v265
    %v267 = vand.u32 %v266, 4294901760
    %v268 = vsub.f32 %v266, %v267
    %v269 = vand.u32 %v268, 4294901760
    %270 = vmatpush1.msra.mxu0 %v269
    %271 = vmatprep.subr.mxu0 0.0
    %v272 = vand.u32 %v79, 4294901760
    %v273 = vsub.f32 %v79, %v272
    %v274 = vand.u32 %v273, 4294901760
    %v275 = vsub.f32 %v273, %v274
    %v276 = vand.u32 %v275, 4294901760
    %277 = vmatpush1.msra.mxu0 %v276
    %278 = vmatprep.subr.mxu0 0.0
    %v279 = vand.u32 %v80, 4294901760
    %v280 = vsub.f32 %v80, %v279
    %v281 = vand.u32 %v280, 4294901760
    %v282 = vsub.f32 %v280, %v281
    %v283 = vand.u32 %v282, 4294901760
    %284 = vmatpush1.msra.mxu0 %v283
    %285 = vmatprep.subr.mxu0 0.0
    %v286 = vand.u32 %v81, 4294901760
    %v287 = vsub.f32 %v81, %v286
    %v288 = vand.u32 %v287, 4294901760
    %v289 = vsub.f32 %v287, %v288
    %v290 = vand.u32 %v289, 4294901760
    %291 = vmatpush1.msra.mxu0 %v290
    %292 = vmatprep.subr.mxu0 0.0
    %293 = vmatpush1.msra.mxu0 0.0
    %294 = vmatprep.subr.mxu0 0.0
    %295 = vmatpush1.msra.mxu0 0.0
    %296 = vmatprep.subr.mxu0 0.0
    %297 = vmatpush1.msra.mxu0 0.0
    %298 = vmatprep.subr.mxu0 0.0
    %299 = vmatpush1.msra.mxu0 0.0
    %300 = vmatprep.subr.mxu0 0.0
    %301 = vmatpush1.msra.mxu0 0.0
    %302 = vmatprep.subr.mxu0 0.0
    %303 = vmatpush1.msra.mxu0 0.0
    %304 = vmatprep.subr.mxu0 0.0
    %305 = vmatpush1.msra.mxu0 0.0
    %306 = vmatprep.subr.mxu0 0.0
    %307 = vmatpush1.msra.mxu0 0.0
    %308 = vmatprep.subr.mxu0 0.0
    %309 = vmatpush1.msra.mxu0 0.0
    %310 = vmatprep.subr.mxu0 0.0
    %311 = vmatpush1.msra.mxu0 0.0
    %312 = vmatprep.subr.mxu0 0.0
    %313 = vmatpush1.msra.mxu0 0.0
    %314 = vmatprep.subr.mxu0 0.0
    %315 = vmatpush1.msra.mxu0 0.0
    %316 = vmatprep.subr.mxu0 0.0
    %317 = vmatpush1.msra.mxu0 0.0
    %318 = vmatprep.subr.mxu0 0.0
    %319 = vmatpush1.msra.mxu0 0.0
    %320 = vmatprep.subr.mxu0 0.0
    %321 = vmatpush1.msra.mxu0 0.0
    %322 = vmatprep.subr.mxu0 0.0
    %323 = vmatpush1.msra.mxu0 0.0
    %324 = vmatprep.mubr.f32.mxu0 0.0
    %v325 = vand.u32 %v65, 4294901760
    %326 = vmatmul.mubr.f32.gmra.mrb[0].mxu0 %v325
    %v327 = vpop.f32.mrb[0].mxu0
    %v328 = vadd.f32 %v177, %v327
    %v329 = vpop.f32.mrb[0].mxu0
    %330 = vdwg.mxu0
    %331 = vmatprep.subr.mxu0 0.0
    %v332 = vand.u32 %v66, 4294901760
    %v333 = vsub.f32 %v66, %v332
    %334 = vmatpush1.msra.mxu0 %v333
    %335 = vmatprep.subr.mxu0 0.0
    %v336 = vand.u32 %v67, 4294901760
    %v337 = vsub.f32 %v67, %v336
    %338 = vmatpush1.msra.mxu0 %v337
    %339 = vmatprep.subr.mxu0 0.0
    %v340 = vand.u32 %v68, 4294901760
    %v341 = vsub.f32 %v68, %v340
    %342 = vmatpush1.msra.mxu0 %v341
    %343 = vmatprep.subr.mxu0 0.0
    %v344 = vand.u32 %v69, 4294901760
    %v345 = vsub.f32 %v69, %v344
    %346 = vmatpush1.msra.mxu0 %v345
    %347 = vmatprep.subr.mxu0 0.0
    %v348 = vand.u32 %v70, 4294901760
    %v349 = vsub.f32 %v70, %v348
    %350 = vmatpush1.msra.mxu0 %v349
    %351 = vmatprep.subr.mxu0 0.0
    %v352 = vand.u32 %v71, 4294901760
    %v353 = vsub.f32 %v71, %v352
    %354 = vmatpush1.msra.mxu0 %v353
    %355 = vmatprep.subr.mxu0 0.0
    %v356 = vand.u32 %v72, 4294901760
    %v357 = vsub.f32 %v72, %v356
    %358 = vmatpush1.msra.mxu0 %v357
    %359 = vmatprep.subr.mxu0 0.0
    %v360 = vand.u32 %v73, 4294901760
    %v361 = vsub.f32 %v73, %v360
    %362 = vmatpush1.msra.mxu0 %v361
    %363 = vmatprep.subr.mxu0 0.0
    %v364 = vand.u32 %v74, 4294901760
    %v365 = vsub.f32 %v74, %v364
    %366 = vmatpush1.msra.mxu0 %v365
    %367 = vmatprep.subr.mxu0 0.0
    %v368 = vand.u32 %v75, 4294901760
    %v369 = vsub.f32 %v75, %v368
    %370 = vmatpush1.msra.mxu0 %v369
    %371 = vmatprep.subr.mxu0 0.0
    %v372 = vand.u32 %v76, 4294901760
    %v373 = vsub.f32 %v76, %v372
    %374 = vmatpush1.msra.mxu0 %v373
    %375 = vmatprep.subr.mxu0 0.0
    %v376 = vand.u32 %v77, 4294901760
    %v377 = vsub.f32 %v77, %v376
    %378 = vmatpush1.msra.mxu0 %v377
    %379 = vmatprep.subr.mxu0 0.0
    %v380 = vand.u32 %v78, 4294901760
    %v381 = vsub.f32 %v78, %v380
    %382 = vmatpush1.msra.mxu0 %v381
    %383 = vmatprep.subr.mxu0 0.0
    %v384 = vand.u32 %v79, 4294901760
    %v385 = vsub.f32 %v79, %v384
    %386 = vmatpush1.msra.mxu0 %v385
    %387 = vmatprep.subr.mxu0 0.0
    %v388 = vand.u32 %v80, 4294901760
    %v389 = vsub.f32 %v80, %v388
    %390 = vmatpush1.msra.mxu0 %v389
    %391 = vmatprep.subr.mxu0 0.0
    %v392 = vand.u32 %v81, 4294901760
    %v393 = vsub.f32 %v81, %v392
    %394 = vmatpush1.msra.mxu0 %v393
    %395 = vmatprep.subr.mxu0 0.0
    %396 = vmatpush1.msra.mxu0 0.0
    %397 = vmatprep.subr.mxu0 0.0
    %398 = vmatpush1.msra.mxu0 0.0
    %399 = vmatprep.subr.mxu0 0.0
    %400 = vmatpush1.msra.mxu0 0.0
    %401 = vmatprep.subr.mxu0 0.0
    %402 = vmatpush1.msra.mxu0 0.0
    %403 = vmatprep.subr.mxu0 0.0
    %404 = vmatpush1.msra.mxu0 0.0
    %405 = vmatprep.subr.mxu0 0.0
    %406 = vmatpush1.msra.mxu0 0.0
    %407 = vmatprep.subr.mxu0 0.0
    %408 = vmatpush1.msra.mxu0 0.0
    %409 = vmatprep.subr.mxu0 0.0
    %410 = vmatpush1.msra.mxu0 0.0
    %411 = vmatprep.subr.mxu0 0.0
    %412 = vmatpush1.msra.mxu0 0.0
    %413 = vmatprep.subr.mxu0 0.0
    %414 = vmatpush1.msra.mxu0 0.0
    %415 = vmatprep.subr.mxu0 0.0
    %416 = vmatpush1.msra.mxu0 0.0
    %417 = vmatprep.subr.mxu0 0.0
    %418 = vmatpush1.msra.mxu0 0.0
    %419 = vmatprep.subr.mxu0 0.0
    %420 = vmatpush1.msra.mxu0 0.0
    %421 = vmatprep.subr.mxu0 0.0
    %422 = vmatpush1.msra.mxu0 0.0
    %423 = vmatprep.subr.mxu0 0.0
    %424 = vmatpush1.msra.mxu0 0.0
    %425 = vmatprep.subr.mxu0 0.0
    %426 = vmatpush1.msra.mxu0 0.0
    %427 = vmatprep.mubr.f32.mxu0 0.0
    %v428 = vand.u32 %v65, 4294901760
    %v429 = vsub.f32 %v65, %v428
    %430 = vmatmul.mubr.f32.gmra.mrb[0].mxu0 %v429
    %v431 = vpop.f32.mrb[0].mxu0
    %v432 = vadd.f32 %v328, %v431
    %v433 = vpop.f32.mrb[0].mxu0
    %434 = vdwg.mxu0
    %435 = vmatprep.subr.mxu0 0.0
    %v436 = vand.u32 %v66, 4294901760
    %437 = vmatpush1.msra.mxu0 %v436
    %438 = vmatprep.subr.mxu0 0.0
    %v439 = vand.u32 %v67, 4294901760
    %440 = vmatpush1.msra.mxu0 %v439
    %441 = vmatprep.subr.mxu0 0.0
    %v442 = vand.u32 %v68, 4294901760
    %443 = vmatpush1.msra.mxu0 %v442
    %444 = vmatprep.subr.mxu0 0.0
    %v445 = vand.u32 %v69, 4294901760
    %446 = vmatpush1.msra.mxu0 %v445
    %447 = vmatprep.subr.mxu0 0.0
    %v448 = vand.u32 %v70, 4294901760
    %449 = vmatpush1.msra.mxu0 %v448
    %450 = vmatprep.subr.mxu0 0.0
    %v451 = vand.u32 %v71, 4294901760
    %452 = vmatpush1.msra.mxu0 %v451
    %453 = vmatprep.subr.mxu0 0.0
    %v454 = vand.u32 %v72, 4294901760
    %455 = vmatpush1.msra.mxu0 %v454
    %456 = vmatprep.subr.mxu0 0.0
    %v457 = vand.u32 %v73, 4294901760
    %458 = vmatpush1.msra.mxu0 %v457
    %459 = vmatprep.subr.mxu0 0.0
    %v460 = vand.u32 %v74, 4294901760
    %461 = vmatpush1.msra.mxu0 %v460
    %462 = vmatprep.subr.mxu0 0.0
    %v463 = vand.u32 %v75, 4294901760
    %464 = vmatpush1.msra.mxu0 %v463
    %465 = vmatprep.subr.mxu0 0.0
    %v466 = vand.u32 %v76, 4294901760
    %467 = vmatpush1.msra.mxu0 %v466
    %468 = vmatprep.subr.mxu0 0.0
    %v469 = vand.u32 %v77, 4294901760
    %470 = vmatpush1.msra.mxu0 %v469
    %471 = vmatprep.subr.mxu0 0.0
    %v472 = vand.u32 %v78, 4294901760
    %473 = vmatpush1.msra.mxu0 %v472
    %474 = vmatprep.subr.mxu0 0.0
    %v475 = vand.u32 %v79, 4294901760
    %476 = vmatpush1.msra.mxu0 %v475
    %477 = vmatprep.subr.mxu0 0.0
    %v478 = vand.u32 %v80, 4294901760
    %479 = vmatpush1.msra.mxu0 %v478
    %480 = vmatprep.subr.mxu0 0.0
    %v481 = vand.u32 %v81, 4294901760
    %482 = vmatpush1.msra.mxu0 %v481
    %483 = vmatprep.subr.mxu0 0.0
    %484 = vmatpush1.msra.mxu0 0.0
    %485 = vmatprep.subr.mxu0 0.0
    %486 = vmatpush1.msra.mxu0 0.0
    %487 = vmatprep.subr.mxu0 0.0
    %488 = vmatpush1.msra.mxu0 0.0
    %489 = vmatprep.subr.mxu0 0.0
    %490 = vmatpush1.msra.mxu0 0.0
    %491 = vmatprep.subr.mxu0 0.0
    %492 = vmatpush1.msra.mxu0 0.0
    %493 = vmatprep.subr.mxu0 0.0
    %494 = vmatpush1.msra.mxu0 0.0
    %495 = vmatprep.subr.mxu0 0.0
    %496 = vmatpush1.msra.mxu0 0.0
    %497 = vmatprep.subr.mxu0 0.0
    %498 = vmatpush1.msra.mxu0 0.0
    %499 = vmatprep.subr.mxu0 0.0
    %500 = vmatpush1.msra.mxu0 0.0
    %501 = vmatprep.subr.mxu0 0.0
    %502 = vmatpush1.msra.mxu0 0.0
    %503 = vmatprep.subr.mxu0 0.0
    %504 = vmatpush1.msra.mxu0 0.0
    %505 = vmatprep.subr.mxu0 0.0
    %506 = vmatpush1.msra.mxu0 0.0
    %507 = vmatprep.subr.mxu0 0.0
    %508 = vmatpush1.msra.mxu0 0.0
    %509 = vmatprep.subr.mxu0 0.0
    %510 = vmatpush1.msra.mxu0 0.0
    %511 = vmatprep.subr.mxu0 0.0
    %512 = vmatpush1.msra.mxu0 0.0
    %513 = vmatprep.subr.mxu0 0.0
    %514 = vmatpush1.msra.mxu0 0.0
    %515 = vmatprep.mubr.f32.mxu0 0.0
    %v516 = vand.u32 %v65, 4294901760
    %v517 = vsub.f32 %v65, %v516
    %v518 = vand.u32 %v517, 4294901760
    %519 = vmatmul.mubr.f32.gmra.mrb[0].mxu0 %v518
    %v520 = vpop.f32.mrb[0].mxu0
    %v521 = vadd.f32 %v432, %v520
    %v522 = vpop.f32.mrb[0].mxu0
    %523 = vdwg.mxu0
    %524 = vmatprep.subr.mxu0 0.0
    %v525 = vand.u32 %v66, 4294901760
    %v526 = vsub.f32 %v66, %v525
    %v527 = vand.u32 %v526, 4294901760
    %528 = vmatpush1.msra.mxu0 %v527
    %529 = vmatprep.subr.mxu0 0.0
    %v530 = vand.u32 %v67, 4294901760
    %v531 = vsub.f32 %v67, %v530
    %v532 = vand.u32 %v531, 4294901760
    %533 = vmatpush1.msra.mxu0 %v532
    %534 = vmatprep.subr.mxu0 0.0
    %v535 = vand.u32 %v68, 4294901760
    %v536 = vsub.f32 %v68, %v535
    %v537 = vand.u32 %v536, 4294901760
    %538 = vmatpush1.msra.mxu0 %v537
    %539 = vmatprep.subr.mxu0 0.0
    %v540 = vand.u32 %v69, 4294901760
    %v541 = vsub.f32 %v69, %v540
    %v542 = vand.u32 %v541, 4294901760
    %543 = vmatpush1.msra.mxu0 %v542
    %544 = vmatprep.subr.mxu0 0.0
    %v545 = vand.u32 %v70, 4294901760
    %v546 = vsub.f32 %v70, %v545
    %v547 = vand.u32 %v546, 4294901760
    %548 = vmatpush1.msra.mxu0 %v547
    %549 = vmatprep.subr.mxu0 0.0
    %v550 = vand.u32 %v71, 4294901760
    %v551 = vsub.f32 %v71, %v550
    %v552 = vand.u32 %v551, 4294901760
    %553 = vmatpush1.msra.mxu0 %v552
    %554 = vmatprep.subr.mxu0 0.0
    %v555 = vand.u32 %v72, 4294901760
    %v556 = vsub.f32 %v72, %v555
    %v557 = vand.u32 %v556, 4294901760
    %558 = vmatpush1.msra.mxu0 %v557
    %559 = vmatprep.subr.mxu0 0.0
    %v560 = vand.u32 %v73, 4294901760
    %v561 = vsub.f32 %v73, %v560
    %v562 = vand.u32 %v561, 4294901760
    %563 = vmatpush1.msra.mxu0 %v562
    %564 = vmatprep.subr.mxu0 0.0
    %v565 = vand.u32 %v74, 4294901760
    %v566 = vsub.f32 %v74, %v565
    %v567 = vand.u32 %v566, 4294901760
    %568 = vmatpush1.msra.mxu0 %v567
    %569 = vmatprep.subr.mxu0 0.0
    %v570 = vand.u32 %v75, 4294901760
    %v571 = vsub.f32 %v75, %v570
    %v572 = vand.u32 %v571, 4294901760
    %573 = vmatpush1.msra.mxu0 %v572
    %574 = vmatprep.subr.mxu0 0.0
    %v575 = vand.u32 %v76, 4294901760
    %v576 = vsub.f32 %v76, %v575
    %v577 = vand.u32 %v576, 4294901760
    %578 = vmatpush1.msra.mxu0 %v577
    %579 = vmatprep.subr.mxu0 0.0
    %v580 = vand.u32 %v77, 4294901760
    %v581 = vsub.f32 %v77, %v580
    %v582 = vand.u32 %v581, 4294901760
    %583 = vmatpush1.msra.mxu0 %v582
    %584 = vmatprep.subr.mxu0 0.0
    %v585 = vand.u32 %v78, 4294901760
    %v586 = vsub.f32 %v78, %v585
    %v587 = vand.u32 %v586, 4294901760
    %588 = vmatpush1.msra.mxu0 %v587
    %589 = vmatprep.subr.mxu0 0.0
    %v590 = vand.u32 %v79, 4294901760
    %v591 = vsub.f32 %v79, %v590
    %v592 = vand.u32 %v591, 4294901760
    %593 = vmatpush1.msra.mxu0 %v592
    %594 = vmatprep.subr.mxu0 0.0
    %v595 = vand.u32 %v80, 4294901760
    %v596 = vsub.f32 %v80, %v595
    %v597 = vand.u32 %v596, 4294901760
    %598 = vmatpush1.msra.mxu0 %v597
    %599 = vmatprep.subr.mxu0 0.0
    %v600 = vand.u32 %v81, 4294901760
    %v601 = vsub.f32 %v81, %v600
    %v602 = vand.u32 %v601, 4294901760
    %603 = vmatpush1.msra.mxu0 %v602
    %604 = vmatprep.subr.mxu0 0.0
    %605 = vmatpush1.msra.mxu0 0.0
    %606 = vmatprep.subr.mxu0 0.0
    %607 = vmatpush1.msra.mxu0 0.0
    %608 = vmatprep.subr.mxu0 0.0
    %609 = vmatpush1.msra.mxu0 0.0
    %610 = vmatprep.subr.mxu0 0.0
    %611 = vmatpush1.msra.mxu0 0.0
    %612 = vmatprep.subr.mxu0 0.0
    %613 = vmatpush1.msra.mxu0 0.0
    %614 = vmatprep.subr.mxu0 0.0
    %615 = vmatpush1.msra.mxu0 0.0
    %616 = vmatprep.subr.mxu0 0.0
    %617 = vmatpush1.msra.mxu0 0.0
    %618 = vmatprep.subr.mxu0 0.0
    %619 = vmatpush1.msra.mxu0 0.0
    %620 = vmatprep.subr.mxu0 0.0
    %621 = vmatpush1.msra.mxu0 0.0
    %622 = vmatprep.subr.mxu0 0.0
    %623 = vmatpush1.msra.mxu0 0.0
    %624 = vmatprep.subr.mxu0 0.0
    %625 = vmatpush1.msra.mxu0 0.0
    %626 = vmatprep.subr.mxu0 0.0
    %627 = vmatpush1.msra.mxu0 0.0
    %628 = vmatprep.subr.mxu0 0.0
    %629 = vmatpush1.msra.mxu0 0.0
    %630 = vmatprep.subr.mxu0 0.0
    %631 = vmatpush1.msra.mxu0 0.0
    %632 = vmatprep.subr.mxu0 0.0
    %633 = vmatpush1.msra.mxu0 0.0
    %634 = vmatprep.subr.mxu0 0.0
    %635 = vmatpush1.msra.mxu0 0.0
    %636 = vmatprep.mubr.f32.mxu0 0.0
    %v637 = vand.u32 %v65, 4294901760
    %638 = vmatmul.mubr.f32.gmra.mrb[0].mxu0 %v637
    %v639 = vpop.f32.mrb[0].mxu0
    %v640 = vadd.f32 %v521, %v639
    %v641 = vpop.f32.mrb[0].mxu0
    %642 = vdwg.mxu0
    %643 = vmatprep.subr.mxu0 0.0
    %v644 = vand.u32 %v66, 4294901760
    %645 = vmatpush1.msra.mxu0 %v644
    %646 = vmatprep.subr.mxu0 0.0
    %v647 = vand.u32 %v67, 4294901760
    %648 = vmatpush1.msra.mxu0 %v647
    %649 = vmatprep.subr.mxu0 0.0
    %v650 = vand.u32 %v68, 4294901760
    %651 = vmatpush1.msra.mxu0 %v650
    %652 = vmatprep.subr.mxu0 0.0
    %v653 = vand.u32 %v69, 4294901760
    %654 = vmatpush1.msra.mxu0 %v653
    %655 = vmatprep.subr.mxu0 0.0
    %v656 = vand.u32 %v70, 4294901760
    %657 = vmatpush1.msra.mxu0 %v656
    %658 = vmatprep.subr.mxu0 0.0
    %v659 = vand.u32 %v71, 4294901760
    %660 = vmatpush1.msra.mxu0 %v659
    %661 = vmatprep.subr.mxu0 0.0
    %v662 = vand.u32 %v72, 4294901760
    %663 = vmatpush1.msra.mxu0 %v662
    %664 = vmatprep.subr.mxu0 0.0
    %v665 = vand.u32 %v73, 4294901760
    %666 = vmatpush1.msra.mxu0 %v665
    %667 = vmatprep.subr.mxu0 0.0
    %v668 = vand.u32 %v74, 4294901760
    %669 = vmatpush1.msra.mxu0 %v668
    %670 = vmatprep.subr.mxu0 0.0
    %v671 = vand.u32 %v75, 4294901760
    %672 = vmatpush1.msra.mxu0 %v671
    %673 = vmatprep.subr.mxu0 0.0
    %v674 = vand.u32 %v76, 4294901760
    %675 = vmatpush1.msra.mxu0 %v674
    %676 = vmatprep.subr.mxu0 0.0
    %v677 = vand.u32 %v77, 4294901760
    %678 = vmatpush1.msra.mxu0 %v677
    %679 = vmatprep.subr.mxu0 0.0
    %v680 = vand.u32 %v78, 4294901760
    %681 = vmatpush1.msra.mxu0 %v680
    %682 = vmatprep.subr.mxu0 0.0
    %v683 = vand.u32 %v79, 4294901760
    %684 = vmatpush1.msra.mxu0 %v683
    %685 = vmatprep.subr.mxu0 0.0
    %v686 = vand.u32 %v80, 4294901760
    %687 = vmatpush1.msra.mxu0 %v686
    %688 = vmatprep.subr.mxu0 0.0
    %v689 = vand.u32 %v81, 4294901760
    %690 = vmatpush1.msra.mxu0 %v689
    %691 = vmatprep.subr.mxu0 0.0
    %692 = vmatpush1.msra.mxu0 0.0
    %693 = vmatprep.subr.mxu0 0.0
    %694 = vmatpush1.msra.mxu0 0.0
    %695 = vmatprep.subr.mxu0 0.0
    %696 = vmatpush1.msra.mxu0 0.0
    %697 = vmatprep.subr.mxu0 0.0
    %698 = vmatpush1.msra.mxu0 0.0
    %699 = vmatprep.subr.mxu0 0.0
    %700 = vmatpush1.msra.mxu0 0.0
    %701 = vmatprep.subr.mxu0 0.0
    %702 = vmatpush1.msra.mxu0 0.0
    %703 = vmatprep.subr.mxu0 0.0
    %704 = vmatpush1.msra.mxu0 0.0
    %705 = vmatprep.subr.mxu0 0.0
    %706 = vmatpush1.msra.mxu0 0.0
    %707 = vmatprep.subr.mxu0 0.0
    %708 = vmatpush1.msra.mxu0 0.0
    %709 = vmatprep.subr.mxu0 0.0
    %710 = vmatpush1.msra.mxu0 0.0
    %711 = vmatprep.subr.mxu0 0.0
    %712 = vmatpush1.msra.mxu0 0.0
    %713 = vmatprep.subr.mxu0 0.0
    %714 = vmatpush1.msra.mxu0 0.0
    %715 = vmatprep.subr.mxu0 0.0
    %716 = vmatpush1.msra.mxu0 0.0
    %717 = vmatprep.subr.mxu0 0.0
    %718 = vmatpush1.msra.mxu0 0.0
    %719 = vmatprep.subr.mxu0 0.0
    %720 = vmatpush1.msra.mxu0 0.0
    %721 = vmatprep.subr.mxu0 0.0
    %722 = vmatpush1.msra.mxu0 0.0
    %723 = vmatprep.mubr.f32.mxu0 0.0
    %v724 = vand.u32 %v65, 4294901760
    %725 = vmatmul.mubr.f32.gmra.mrb[0].mxu0 %v724
    %v726 = vpop.f32.mrb[0].mxu0
    %v727 = vadd.f32 %v640, %v726
    %v728 = vpop.f32.mrb[0].mxu0
    %729 = vdwg.mxu0
    %v730 = vmax.f32 %v727, 0.0
    %v731 = vld [vmem:[#allocation2] sm:$0xff]
    %v732 = vld [vmem:[#allocation8] sm:$0xff]
    %v733 = vld [vmem:[#allocation8 + $0x8] sm:$0xff]
    %v734 = vld [vmem:[#allocation8 + $0x10] sm:$0xff]
    %v735 = vld [vmem:[#allocation8 + $0x18] sm:$0xff]
    %v736 = vld [vmem:[#allocation8 + $0x20] sm:$0xff]
    %v737 = vld [vmem:[#allocation8 + $0x28] sm:$0xff]
    %v738 = vld [vmem:[#allocation8 + $0x30] sm:$0xff]
    %v739 = vld [vmem:[#allocation8 + $0x38] sm:$0xff]
    %v740 = vld [vmem:[#allocation8 + $0x40] sm:$0xff]
    %v741 = vld [vmem:[#allocation8 + $0x48] sm:$0xff]
    %v742 = vld [vmem:[#allocation8 + $0x50] sm:$0xff]
    %v743 = vld [vmem:[#allocation8 + $0x58] sm:$0xff]
    %v744 = vld [vmem:[#allocation8 + $0x60] sm:$0xff]
    %v745 = vld [vmem:[#allocation8 + $0x68] sm:$0xff]
    %v746 = vld [vmem:[#allocation8 + $0x70] sm:$0xff]
    %v747 = vld [vmem:[#allocation8 + $0x78] sm:$0xff]
    %748 = vmatprep.subr.mxu0 0.0
    %v749 = vand.u32 %v732, 4294901760
    %750 = vmatpush1.msra.mxu0 %v749
    %751 = vmatprep.subr.mxu0 0.0
    %v752 = vand.u32 %v733, 4294901760
    %753 = vmatpush1.msra.mxu0 %v752
    %754 = vmatprep.subr.mxu0 0.0
    %v755 = vand.u32 %v734, 4294901760
    %756 = vmatpush1.msra.mxu0 %v755
    %757 = vmatprep.subr.mxu0 0.0
    %v758 = vand.u32 %v735, 4294901760
    %759 = vmatpush1.msra.mxu0 %v758
    %760 = vmatprep.subr.mxu0 0.0
    %v761 = vand.u32 %v736, 4294901760
    %762 = vmatpush1.msra.mxu0 %v761
    %763 = vmatprep.subr.mxu0 0.0
    %v764 = vand.u32 %v737, 4294901760
    %765 = vmatpush1.msra.mxu0 %v764
    %766 = vmatprep.subr.mxu0 0.0
    %v767 = vand.u32 %v738, 4294901760
    %768 = vmatpush1.msra.mxu0 %v767
    %769 = vmatprep.subr.mxu0 0.0
    %v770 = vand.u32 %v739, 4294901760
    %771 = vmatpush1.msra.mxu0 %v770
    %772 = vmatprep.subr.mxu0 0.0
    %v773 = vand.u32 %v740, 4294901760
    %774 = vmatpush1.msra.mxu0 %v773
    %775 = vmatprep.subr.mxu0 0.0
    %v776 = vand.u32 %v741, 4294901760
    %777 = vmatpush1.msra.mxu0 %v776
    %778 = vmatprep.subr.mxu0 0.0
    %v779 = vand.u32 %v742, 4294901760
    %780 = vmatpush1.msra.mxu0 %v779
    %781 = vmatprep.subr.mxu0 0.0
    %v782 = vand.u32 %v743, 4294901760
    %783 = vmatpush1.msra.mxu0 %v782
    %784 = vmatprep.subr.mxu0 0.0
    %v785 = vand.u32 %v744, 4294901760
    %786 = vmatpush1.msra.mxu0 %v785
    %787 = vmatprep.subr.mxu0 0.0
    %v788 = vand.u32 %v745, 4294901760
    %789 = vmatpush1.msra.mxu0 %v788
    %790 = vmatprep.subr.mxu0 0.0
    %v791 = vand.u32 %v746, 4294901760
    %792 = vmatpush1.msra.mxu0 %v791
    %793 = vmatprep.subr.mxu0 0.0
    %v794 = vand.u32 %v747, 4294901760
    %795 = vmatpush1.msra.mxu0 %v794
    %796 = vmatprep.subr.mxu0 0.0
    %797 = vmatpush1.msra.mxu0 0.0
    %798 = vmatprep.subr.mxu0 0.0
    %799 = vmatpush1.msra.mxu0 0.0
    %800 = vmatprep.subr.mxu0 0.0
    %801 = vmatpush1.msra.mxu0 0.0
    %802 = vmatprep.subr.mxu0 0.0
    %803 = vmatpush1.msra.mxu0 0.0
    %804 = vmatprep.subr.mxu0 0.0
    %805 = vmatpush1.msra.mxu0 0.0
    %806 = vmatprep.subr.mxu0 0.0
    %807 = vmatpush1.msra.mxu0 0.0
    %808 = vmatprep.subr.mxu0 0.0
    %809 = vmatpush1.msra.mxu0 0.0
    %810 = vmatprep.subr.mxu0 0.0
    %811 = vmatpush1.msra.mxu0 0.0
    %812 = vmatprep.subr.mxu0 0.0
    %813 = vmatpush1.msra.mxu0 0.0
    %814 = vmatprep.subr.mxu0 0.0
    %815 = vmatpush1.msra.mxu0 0.0
    %816 = vmatprep.subr.mxu0 0.0
    %817 = vmatpush1.msra.mxu0 0.0
    %818 = vmatprep.subr.mxu0 0.0
    %819 = vmatpush1.msra.mxu0 0.0
    %820 = vmatprep.subr.mxu0 0.0
    %821 = vmatpush1.msra.mxu0 0.0
    %822 = vmatprep.subr.mxu0 0.0
    %823 = vmatpush1.msra.mxu0 0.0
    %824 = vmatprep.subr.mxu0 0.0
    %825 = vmatpush1.msra.mxu0 0.0
    %826 = vmatprep.subr.mxu0 0.0
    %827 = vmatpush1.msra.mxu0 0.0
    %828 = vmatprep.mubr.f32.mxu0 0.0
    %v829 = vand.u32 %v730, 4294901760
    %v830 = vsub.f32 %v730, %v829
    %v831 = vand.u32 %v830, 4294901760
    %v832 = vsub.f32 %v830, %v831
    %v833 = vand.u32 %v832, 4294901760
    %834 = vmatmul.mubr.f32.gmra.mrb[0].mxu0 %v833
    %v835 = vpop.f32.mrb[0].mxu0
    %v836 = vadd.f32 0.0, %v835
    %v837 = vpop.f32.mrb[0].mxu0
    %838 = vdwg.mxu0
    %839 = vmatprep.subr.mxu0 0.0
    %v840 = vand.u32 %v732, 4294901760
    %v841 = vsub.f32 %v732, %v840
    %v842 = vand.u32 %v841, 4294901760
    %v843 = vsub.f32 %v841, %v842
    %v844 = vand.u32 %v843, 4294901760
    %845 = vmatpush1.msra.mxu0 %v844
    %846 = vmatprep.subr.mxu0 0.0
    %v847 = vand.u32 %v733, 4294901760
    %v848 = vsub.f32 %v733, %v847
    %v849 = vand.u32 %v848, 4294901760
    %v850 = vsub.f32 %v848, %v849
    %v851 = vand.u32 %v850, 4294901760
    %852 = vmatpush1.msra.mxu0 %v851
    %853 = vmatprep.subr.mxu0 0.0
    %v854 = vand.u32 %v734, 4294901760
    %v855 = vsub.f32 %v734, %v854
    %v856 = vand.u32 %v855, 4294901760
    %v857 = vsub.f32 %v855, %v856
    %v858 = vand.u32 %v857, 4294901760
    %859 = vmatpush1.msra.mxu0 %v858
    %860 = vmatprep.subr.mxu0 0.0
    %v861 = vand.u32 %v735, 4294901760
    %v862 = vsub.f32 %v735, %v861
    %v863 = vand.u32 %v862, 4294901760
    %v864 = vsub.f32 %v862, %v863
    %v865 = vand.u32 %v864, 4294901760
    %866 = vmatpush1.msra.mxu0 %v865
    %867 = vmatprep.subr.mxu0 0.0
    %v868 = vand.u32 %v736, 4294901760
    %v869 = vsub.f32 %v736, %v868
    %v870 = vand.u32 %v869, 4294901760
    %v871 = vsub.f32 %v869, %v870
    %v872 = vand.u32 %v871, 4294901760
    %873 = vmatpush1.msra.mxu0 %v872
    %874 = vmatprep.subr.mxu0 0.0
    %v875 = vand.u32 %v737, 4294901760
    %v876 = vsub.f32 %v737, %v875
    %v877 = vand.u32 %v876, 4294901760
    %v878 = vsub.f32 %v876, %v877
    %v879 = vand.u32 %v878, 4294901760
    %880 = vmatpush1.msra.mxu0 %v879
    %881 = vmatprep.subr.mxu0 0.0
    %v882 = vand.u32 %v738, 4294901760
    %v883 = vsub.f32 %v738, %v882
    %v884 = vand.u32 %v883, 4294901760
    %v885 = vsub.f32 %v883, %v884
    %v886 = vand.u32 %v885, 4294901760
    %887 = vmatpush1.msra.mxu0 %v886
    %888 = vmatprep.subr.mxu0 0.0
    %v889 = vand.u32 %v739, 4294901760
    %v890 = vsub.f32 %v739, %v889
    %v891 = vand.u32 %v890, 4294901760
    %v892 = vsub.f32 %v890, %v891
    %v893 = vand.u32 %v892, 4294901760
    %894 = vmatpush1.msra.mxu0 %v893
    %895 = vmatprep.subr.mxu0 0.0
    %v896 = vand.u32 %v740, 4294901760
    %v897 = vsub.f32 %v740, %v896
    %v898 = vand.u32 %v897, 4294901760
    %v899 = vsub.f32 %v897, %v898
    %v900 = vand.u32 %v899, 4294901760
    %901 = vmatpush1.msra.mxu0 %v900
    %902 = vmatprep.subr.mxu0 0.0
    %v903 = vand.u32 %v741, 4294901760
    %v904 = vsub.f32 %v741, %v903
    %v905 = vand.u32 %v904, 4294901760
    %v906 = vsub.f32 %v904, %v905
    %v907 = vand.u32 %v906, 4294901760
    %908 = vmatpush1.msra.mxu0 %v907
    %909 = vmatprep.subr.mxu0 0.0
    %v910 = vand.u32 %v742, 4294901760
    %v911 = vsub.f32 %v742, %v910
    %v912 = vand.u32 %v911, 4294901760
    %v913 = vsub.f32 %v911, %v912
    %v914 = vand.u32 %v913, 4294901760
    %915 = vmatpush1.msra.mxu0 %v914
    %916 = vmatprep.subr.mxu0 0.0
    %v917 = vand.u32 %v743, 4294901760
    %v918 = vsub.f32 %v743, %v917
    %v919 = vand.u32 %v918, 4294901760
    %v920 = vsub.f32 %v918, %v919
    %v921 = vand.u32 %v920, 4294901760
    %922 = vmatpush1.msra.mxu0 %v921
    %923 = vmatprep.subr.mxu0 0.0
    %v924 = vand.u32 %v744, 4294901760
    %v925 = vsub.f32 %v744, %v924
    %v926 = vand.u32 %v925, 4294901760
    %v927 = vsub.f32 %v925, %v926
    %v928 = vand.u32 %v927, 4294901760
    %929 = vmatpush1.msra.mxu0 %v928
    %930 = vmatprep.subr.mxu0 0.0
    %v931 = vand.u32 %v745, 4294901760
    %v932 = vsub.f32 %v745, %v931
    %v933 = vand.u32 %v932, 4294901760
    %v934 = vsub.f32 %v932, %v933
    %v935 = vand.u32 %v934, 4294901760
    %936 = vmatpush1.msra.mxu0 %v935
    %937 = vmatprep.subr.mxu0 0.0
    %v938 = vand.u32 %v746, 4294901760
    %v939 = vsub.f32 %v746, %v938
    %v940 = vand.u32 %v939, 4294901760
    %v941 = vsub.f32 %v939, %v940
    %v942 = vand.u32 %v941, 4294901760
    %943 = vmatpush1.msra.mxu0 %v942
    %944 = vmatprep.subr.mxu0 0.0
    %v945 = vand.u32 %v747, 4294901760
    %v946 = vsub.f32 %v747, %v945
    %v947 = vand.u32 %v946, 4294901760
    %v948 = vsub.f32 %v946, %v947
    %v949 = vand.u32 %v948, 4294901760
    %950 = vmatpush1.msra.mxu0 %v949
    %951 = vmatprep.subr.mxu0 0.0
    %952 = vmatpush1.msra.mxu0 0.0
    %953 = vmatprep.subr.mxu0 0.0
    %954 = vmatpush1.msra.mxu0 0.0
    %955 = vmatprep.subr.mxu0 0.0
    %956 = vmatpush1.msra.mxu0 0.0
    %957 = vmatprep.subr.mxu0 0.0
    %958 = vmatpush1.msra.mxu0 0.0
    %959 = vmatprep.subr.mxu0 0.0
    %960 = vmatpush1.msra.mxu0 0.0
    %961 = vmatprep.subr.mxu0 0.0
    %962 = vmatpush1.msra.mxu0 0.0
    %963 = vmatprep.subr.mxu0 0.0
    %964 = vmatpush1.msra.mxu0 0.0
    %965 = vmatprep.subr.mxu0 0.0
    %966 = vmatpush1.msra.mxu0 0.0
    %967 = vmatprep.subr.mxu0 0.0
    %968 = vmatpush1.msra.mxu0 0.0
    %969 = vmatprep.subr.mxu0 0.0
    %970 = vmatpush1.msra.mxu0 0.0
    %971 = vmatprep.subr.mxu0 0.0
    %972 = vmatpush1.msra.mxu0 0.0
    %973 = vmatprep.subr.mxu0 0.0
    %974 = vmatpush1.msra.mxu0 0.0
    %975 = vmatprep.subr.mxu0 0.0
    %976 = vmatpush1.msra.mxu0 0.0
    %977 = vmatprep.subr.mxu0 0.0
    %978 = vmatpush1.msra.mxu0 0.0
    %979 = vmatprep.subr.mxu0 0.0
    %980 = vmatpush1.msra.mxu0 0.0
    %981 = vmatprep.subr.mxu0 0.0
    %982 = vmatpush1.msra.mxu0 0.0
    %983 = vmatprep.mubr.f32.mxu0 0.0
    %v984 = vand.u32 %v730, 4294901760
    %985 = vmatmul.mubr.f32.gmra.mrb[0].mxu0 %v984
    %v986 = vpop.f32.mrb[0].mxu0
    %v987 = vadd.f32 %v836, %v986
    %v988 = vpop.f32.mrb[0].mxu0
    %989 = vdwg.mxu0
    %990 = vmatprep.subr.mxu0 0.0
    %v991 = vand.u32 %v732, 4294901760
    %v992 = vsub.f32 %v732, %v991
    %993 = vmatpush1.msra.mxu0 %v992
    %994 = vmatprep.subr.mxu0 0.0
    %v995 = vand.u32 %v733, 4294901760
    %v996 = vsub.f32 %v733, %v995
    %997 = vmatpush1.msra.mxu0 %v996
    %998 = vmatprep.subr.mxu0 0.0
    %v999 = vand.u32 %v734, 4294901760
    %v1000 = vsub.f32 %v734, %v999
    %1001 = vmatpush1.msra.mxu0 %v1000
    %1002 = vmatprep.subr.mxu0 0.0
    %v1003 = vand.u32 %v735, 4294901760
    %v1004 = vsub.f32 %v735, %v1003
    %1005 = vmatpush1.msra.mxu0 %v1004
    %1006 = vmatprep.subr.mxu0 0.0
    %v1007 = vand.u32 %v736, 4294901760
    %v1008 = vsub.f32 %v736, %v1007
    %1009 = vmatpush1.msra.mxu0 %v1008
    %1010 = vmatprep.subr.mxu0 0.0
    %v1011 = vand.u32 %v737, 4294901760
    %v1012 = vsub.f32 %v737, %v1011
    %1013 = vmatpush1.msra.mxu0 %v1012
    %1014 = vmatprep.subr.mxu0 0.0
    %v1015 = vand.u32 %v738, 4294901760
    %v1016 = vsub.f32 %v738, %v1015
    %1017 = vmatpush1.msra.mxu0 %v1016
    %1018 = vmatprep.subr.mxu0 0.0
    %v1019 = vand.u32 %v739, 4294901760
    %v1020 = vsub.f32 %v739, %v1019
    %1021 = vmatpush1.msra.mxu0 %v1020
    %1022 = vmatprep.subr.mxu0 0.0
    %v1023 = vand.u32 %v740, 4294901760
    %v1024 = vsub.f32 %v740, %v1023
    %1025 = vmatpush1.msra.mxu0 %v1024
    %1026 = vmatprep.subr.mxu0 0.0
    %v1027 = vand.u32 %v741, 4294901760
    %v1028 = vsub.f32 %v741, %v1027
    %1029 = vmatpush1.msra.mxu0 %v1028
    %1030 = vmatprep.subr.mxu0 0.0
    %v1031 = vand.u32 %v742, 4294901760
    %v1032 = vsub.f32 %v742, %v1031
    %1033 = vmatpush1.msra.mxu0 %v1032
    %1034 = vmatprep.subr.mxu0 0.0
    %v1035 = vand.u32 %v743, 4294901760
    %v1036 = vsub.f32 %v743, %v1035
    %1037 = vmatpush1.msra.mxu0 %v1036
    %1038 = vmatprep.subr.mxu0 0.0
    %v1039 = vand.u32 %v744, 4294901760
    %v1040 = vsub.f32 %v744, %v1039
    %1041 = vmatpush1.msra.mxu0 %v1040
    %1042 = vmatprep.subr.mxu0 0.0
    %v1043 = vand.u32 %v745, 4294901760
    %v1044 = vsub.f32 %v745, %v1043
    %1045 = vmatpush1.msra.mxu0 %v1044
    %1046 = vmatprep.subr.mxu0 0.0
    %v1047 = vand.u32 %v746, 4294901760
    %v1048 = vsub.f32 %v746, %v1047
    %1049 = vmatpush1.msra.mxu0 %v1048
    %1050 = vmatprep.subr.mxu0 0.0
    %v1051 = vand.u32 %v747, 4294901760
    %v1052 = vsub.f32 %v747, %v1051
    %1053 = vmatpush1.msra.mxu0 %v1052
    %1054 = vmatprep.subr.mxu0 0.0
    %1055 = vmatpush1.msra.mxu0 0.0
    %1056 = vmatprep.subr.mxu0 0.0
    %1057 = vmatpush1.msra.mxu0 0.0
    %1058 = vmatprep.subr.mxu0 0.0
    %1059 = vmatpush1.msra.mxu0 0.0
    %1060 = vmatprep.subr.mxu0 0.0
    %1061 = vmatpush1.msra.mxu0 0.0
    %1062 = vmatprep.subr.mxu0 0.0
    %1063 = vmatpush1.msra.mxu0 0.0
    %1064 = vmatprep.subr.mxu0 0.0
    %1065 = vmatpush1.msra.mxu0 0.0
    %1066 = vmatprep.subr.mxu0 0.0
    %1067 = vmatpush1.msra.mxu0 0.0
    %1068 = vmatprep.subr.mxu0 0.0
    %1069 = vmatpush1.msra.mxu0 0.0
    %1070 = vmatprep.subr.mxu0 0.0
    %1071 = vmatpush1.msra.mxu0 0.0
    %1072 = vmatprep.subr.mxu0 0.0
    %1073 = vmatpush1.msra.mxu0 0.0
    %1074 = vmatprep.subr.mxu0 0.0
    %1075 = vmatpush1.msra.mxu0 0.0
    %1076 = vmatprep.subr.mxu0 0.0
    %1077 = vmatpush1.msra.mxu0 0.0
    %1078 = vmatprep.subr.mxu0 0.0
    %1079 = vmatpush1.msra.mxu0 0.0
    %1080 = vmatprep.subr.mxu0 0.0
    %1081 = vmatpush1.msra.mxu0 0.0
    %1082 = vmatprep.subr.mxu0 0.0
    %1083 = vmatpush1.msra.mxu0 0.0
    %1084 = vmatprep.subr.mxu0 0.0
    %1085 = vmatpush1.msra.mxu0 0.0
    %1086 = vmatprep.mubr.f32.mxu0 0.0
    %v1087 = vand.u32 %v730, 4294901760
    %v1088 = vsub.f32 %v730, %v1087
    %1089 = vmatmul.mubr.f32.gmra.mrb[0].mxu0 %v1088
    %v1090 = vpop.f32.mrb[0].mxu0
    %v1091 = vadd.f32 %v987, %v1090
    %v1092 = vpop.f32.mrb[0].mxu0
    %1093 = vdwg.mxu0
    %1094 = vmatprep.subr.mxu0 0.0
    %v1095 = vand.u32 %v732, 4294901760
    %1096 = vmatpush1.msra.mxu0 %v1095
    %1097 = vmatprep.subr.mxu0 0.0
    %v1098 = vand.u32 %v733, 4294901760
    %1099 = vmatpush1.msra.mxu0 %v1098
    %1100 = vmatprep.subr.mxu0 0.0
    %v1101 = vand.u32 %v734, 4294901760
    %1102 = vmatpush1.msra.mxu0 %v1101
    %1103 = vmatprep.subr.mxu0 0.0
    %v1104 = vand.u32 %v735, 4294901760
    %1105 = vmatpush1.msra.mxu0 %v1104
    %1106 = vmatprep.subr.mxu0 0.0
    %v1107 = vand.u32 %v736, 4294901760
    %1108 = vmatpush1.msra.mxu0 %v1107
    %1109 = vmatprep.subr.mxu0 0.0
    %v1110 = vand.u32 %v737, 4294901760
    %1111 = vmatpush1.msra.mxu0 %v1110
    %1112 = vmatprep.subr.mxu0 0.0
    %v1113 = vand.u32 %v738, 4294901760
    %1114 = vmatpush1.msra.mxu0 %v1113
    %1115 = vmatprep.subr.mxu0 0.0
    %v1116 = vand.u32 %v739, 4294901760
    %1117 = vmatpush1.msra.mxu0 %v1116
    %1118 = vmatprep.subr.mxu0 0.0
    %v1119 = vand.u32 %v740, 4294901760
    %1120 = vmatpush1.msra.mxu0 %v1119
    %1121 = vmatprep.subr.mxu0 0.0
    %v1122 = vand.u32 %v741, 4294901760
    %1123 = vmatpush1.msra.mxu0 %v1122
    %1124 = vmatprep.subr.mxu0 0.0
    %v1125 = vand.u32 %v742, 4294901760
    %1126 = vmatpush1.msra.mxu0 %v1125
    %1127 = vmatprep.subr.mxu0 0.0
    %v1128 = vand.u32 %v743, 4294901760
    %1129 = vmatpush1.msra.mxu0 %v1128
    %1130 = vmatprep.subr.mxu0 0.0
    %v1131 = vand.u32 %v744, 4294901760
    %1132 = vmatpush1.msra.mxu0 %v1131
    %1133 = vmatprep.subr.mxu0 0.0
    %v1134 = vand.u32 %v745, 4294901760
    %1135 = vmatpush1.msra.mxu0 %v1134
    %1136 = vmatprep.subr.mxu0 0.0
    %v1137 = vand.u32 %v746, 4294901760
    %1138 = vmatpush1.msra.mxu0 %v1137
    %1139 = vmatprep.subr.mxu0 0.0
    %v1140 = vand.u32 %v747, 4294901760
    %1141 = vmatpush1.msra.mxu0 %v1140
    %1142 = vmatprep.subr.mxu0 0.0
    %1143 = vmatpush1.msra.mxu0 0.0
    %1144 = vmatprep.subr.mxu0 0.0
    %1145 = vmatpush1.msra.mxu0 0.0
    %1146 = vmatprep.subr.mxu0 0.0
    %1147 = vmatpush1.msra.mxu0 0.0
    %1148 = vmatprep.subr.mxu0 0.0
    %1149 = vmatpush1.msra.mxu0 0.0
    %1150 = vmatprep.subr.mxu0 0.0
    %1151 = vmatpush1.msra.mxu0 0.0
    %1152 = vmatprep.subr.mxu0 0.0
    %1153 = vmatpush1.msra.mxu0 0.0
    %1154 = vmatprep.subr.mxu0 0.0
    %1155 = vmatpush1.msra.mxu0 0.0
    %1156 = vmatprep.subr.mxu0 0.0
    %1157 = vmatpush1.msra.mxu0 0.0
    %1158 = vmatprep.subr.mxu0 0.0
    %1159 = vmatpush1.msra.mxu0 0.0
    %1160 = vmatprep.subr.mxu0 0.0
    %1161 = vmatpush1.msra.mxu0 0.0
    %1162 = vmatprep.subr.mxu0 0.0
    %1163 = vmatpush1.msra.mxu0 0.0
    %1164 = vmatprep.subr.mxu0 0.0
    %1165 = vmatpush1.msra.mxu0 0.0
    %1166 = vmatprep.subr.mxu0 0.0
    %1167 = vmatpush1.msra.mxu0 0.0
    %1168 = vmatprep.subr.mxu0 0.0
    %1169 = vmatpush1.msra.mxu0 0.0
    %1170 = vmatprep.subr.mxu0 0.0
    %1171 = vmatpush1.msra.mxu0 0.0
    %1172 = vmatprep.subr.mxu0 0.0
    %1173 = vmatpush1.msra.mxu0 0.0
    %1174 = vmatprep.mubr.f32.mxu0 0.0
    %v1175 = vand.u32 %v730, 4294901760
    %v1176 = vsub.f32 %v730, %v1175
    %v1177 = vand.u32 %v1176, 4294901760
    %1178 = vmatmul.mubr.f32.gmra.mrb[0].mxu0 %v1177
    %v1179 = vpop.f32.mrb[0].mxu0
    %v1180 = vadd.f32 %v1091, %v1179
    %v1181 = vpop.f32.mrb[0].mxu0
    %1182 = vdwg.mxu0
    %1183 = vmatprep.subr.mxu0 0.0
    %v1184 = vand.u32 %v732, 4294901760
    %v1185 = vsub.f32 %v732, %v1184
    %v1186 = vand.u32 %v1185, 4294901760
    %1187 = vmatpush1.msra.mxu0 %v1186
    %1188 = vmatprep.subr.mxu0 0.0
    %v1189 = vand.u32 %v733, 4294901760
    %v1190 = vsub.f32 %v733, %v1189
    %v1191 = vand.u32 %v1190, 4294901760
    %1192 = vmatpush1.msra.mxu0 %v1191
    %1193 = vmatprep.subr.mxu0 0.0
    %v1194 = vand.u32 %v734, 4294901760
    %v1195 = vsub.f32 %v734, %v1194
    %v1196 = vand.u32 %v1195, 4294901760
    %1197 = vmatpush1.msra.mxu0 %v1196
    %1198 = vmatprep.subr.mxu0 0.0
    %v1199 = vand.u32 %v735, 4294901760
    %v1200 = vsub.f32 %v735, %v1199
    %v1201 = vand.u32 %v1200, 4294901760
    %1202 = vmatpush1.msra.mxu0 %v1201
    %1203 = vmatprep.subr.mxu0 0.0
    %v1204 = vand.u32 %v736, 4294901760
    %v1205 = vsub.f32 %v736, %v1204
    %v1206 = vand.u32 %v1205, 4294901760
    %1207 = vmatpush1.msra.mxu0 %v1206
    %1208 = vmatprep.subr.mxu0 0.0
    %v1209 = vand.u32 %v737, 4294901760
    %v1210 = vsub.f32 %v737, %v1209
    %v1211 = vand.u32 %v1210, 4294901760
    %1212 = vmatpush1.msra.mxu0 %v1211
    %1213 = vmatprep.subr.mxu0 0.0
    %v1214 = vand.u32 %v738, 4294901760
    %v1215 = vsub.f32 %v738, %v1214
    %v1216 = vand.u32 %v1215, 4294901760
    %1217 = vmatpush1.msra.mxu0 %v1216
    %1218 = vmatprep.subr.mxu0 0.0
    %v1219 = vand.u32 %v739, 4294901760
    %v1220 = vsub.f32 %v739, %v1219
    %v1221 = vand.u32 %v1220, 4294901760
    %1222 = vmatpush1.msra.mxu0 %v1221
    %1223 = vmatprep.subr.mxu0 0.0
    %v1224 = vand.u32 %v740, 4294901760
    %v1225 = vsub.f32 %v740, %v1224
    %v1226 = vand.u32 %v1225, 4294901760
    %1227 = vmatpush1.msra.mxu0 %v1226
    %1228 = vmatprep.subr.mxu0 0.0
    %v1229 = vand.u32 %v741, 4294901760
    %v1230 = vsub.f32 %v741, %v1229
    %v1231 = vand.u32 %v1230, 4294901760
    %1232 = vmatpush1.msra.mxu0 %v1231
    %1233 = vmatprep.subr.mxu0 0.0
    %v1234 = vand.u32 %v742, 4294901760
    %v1235 = vsub.f32 %v742, %v1234
    %v1236 = vand.u32 %v1235, 4294901760
    %1237 = vmatpush1.msra.mxu0 %v1236
    %1238 = vmatprep.subr.mxu0 0.0
    %v1239 = vand.u32 %v743, 4294901760
    %v1240 = vsub.f32 %v743, %v1239
    %v1241 = vand.u32 %v1240, 4294901760
    %1242 = vmatpush1.msra.mxu0 %v1241
    %1243 = vmatprep.subr.mxu0 0.0
    %v1244 = vand.u32 %v744, 4294901760
    %v1245 = vsub.f32 %v744, %v1244
    %v1246 = vand.u32 %v1245, 4294901760
    %1247 = vmatpush1.msra.mxu0 %v1246
    %1248 = vmatprep.subr.mxu0 0.0
    %v1249 = vand.u32 %v745, 4294901760
    %v1250 = vsub.f32 %v745, %v1249
    %v1251 = vand.u32 %v1250, 4294901760
    %1252 = vmatpush1.msra.mxu0 %v1251
    %1253 = vmatprep.subr.mxu0 0.0
    %v1254 = vand.u32 %v746, 4294901760
    %v1255 = vsub.f32 %v746, %v1254
    %v1256 = vand.u32 %v1255, 4294901760
    %1257 = vmatpush1.msra.mxu0 %v1256
    %1258 = vmatprep.subr.mxu0 0.0
    %v1259 = vand.u32 %v747, 4294901760
    %v1260 = vsub.f32 %v747, %v1259
    %v1261 = vand.u32 %v1260, 4294901760
    %1262 = vmatpush1.msra.mxu0 %v1261
    %1263 = vmatprep.subr.mxu0 0.0
    %1264 = vmatpush1.msra.mxu0 0.0
    %1265 = vmatprep.subr.mxu0 0.0
    %1266 = vmatpush1.msra.mxu0 0.0
    %1267 = vmatprep.subr.mxu0 0.0
    %1268 = vmatpush1.msra.mxu0 0.0
    %1269 = vmatprep.subr.mxu0 0.0
    %1270 = vmatpush1.msra.mxu0 0.0
    %1271 = vmatprep.subr.mxu0 0.0
    %1272 = vmatpush1.msra.mxu0 0.0
    %1273 = vmatprep.subr.mxu0 0.0
    %1274 = vmatpush1.msra.mxu0 0.0
    %1275 = vmatprep.subr.mxu0 0.0
    %1276 = vmatpush1.msra.mxu0 0.0
    %1277 = vmatprep.subr.mxu0 0.0
    %1278 = vmatpush1.msra.mxu0 0.0
    %1279 = vmatprep.subr.mxu0 0.0
    %1280 = vmatpush1.msra.mxu0 0.0
    %1281 = vmatprep.subr.mxu0 0.0
    %1282 = vmatpush1.msra.mxu0 0.0
    %1283 = vmatprep.subr.mxu0 0.0
    %1284 = vmatpush1.msra.mxu0 0.0
    %1285 = vmatprep.subr.mxu0 0.0
    %1286 = vmatpush1.msra.mxu0 0.0
    %1287 = vmatprep.subr.mxu0 0.0
    %1288 = vmatpush1.msra.mxu0 0.0
    %1289 = vmatprep.subr.mxu0 0.0
    %1290 = vmatpush1.msra.mxu0 0.0
    %1291 = vmatprep.subr.mxu0 0.0
    %1292 = vmatpush1.msra.mxu0 0.0
    %1293 = vmatprep.subr.mxu0 0.0
    %1294 = vmatpush1.msra.mxu0 0.0
    %1295 = vmatprep.mubr.f32.mxu0 0.0
    %v1296 = vand.u32 %v730, 4294901760
    %1297 = vmatmul.mubr.f32.gmra.mrb[0].mxu0 %v1296
    %v1298 = vpop.f32.mrb[0].mxu0
    %v1299 = vadd.f32 %v1180, %v1298
    %v1300 = vpop.f32.mrb[0].mxu0
    %1301 = vdwg.mxu0
    %1302 = vmatprep.subr.mxu0 0.0
    %v1303 = vand.u32 %v732, 4294901760
    %1304 = vmatpush1.msra.mxu0 %v1303
    %1305 = vmatprep.subr.mxu0 0.0
    %v1306 = vand.u32 %v733, 4294901760
    %1307 = vmatpush1.msra.mxu0 %v1306
    %1308 = vmatprep.subr.mxu0 0.0
    %v1309 = vand.u32 %v734, 4294901760
    %1310 = vmatpush1.msra.mxu0 %v1309
    %1311 = vmatprep.subr.mxu0 0.0
    %v1312 = vand.u32 %v735, 4294901760
    %1313 = vmatpush1.msra.mxu0 %v1312
    %1314 = vmatprep.subr.mxu0 0.0
    %v1315 = vand.u32 %v736, 4294901760
    %1316 = vmatpush1.msra.mxu0 %v1315
    %1317 = vmatprep.subr.mxu0 0.0
    %v1318 = vand.u32 %v737, 4294901760
    %1319 = vmatpush1.msra.mxu0 %v1318
    %1320 = vmatprep.subr.mxu0 0.0
    %v1321 = vand.u32 %v738, 4294901760
    %1322 = vmatpush1.msra.mxu0 %v1321
    %1323 = vmatprep.subr.mxu0 0.0
    %v1324 = vand.u32 %v739, 4294901760
    %1325 = vmatpush1.msra.mxu0 %v1324
    %1326 = vmatprep.subr.mxu0 0.0
    %v1327 = vand.u32 %v740, 4294901760
    %1328 = vmatpush1.msra.mxu0 %v1327
    %1329 = vmatprep.subr.mxu0 0.0
    %v1330 = vand.u32 %v741, 4294901760
    %1331 = vmatpush1.msra.mxu0 %v1330
    %1332 = vmatprep.subr.mxu0 0.0
    %v1333 = vand.u32 %v742, 4294901760
    %1334 = vmatpush1.msra.mxu0 %v1333
    %1335 = vmatprep.subr.mxu0 0.0
    %v1336 = vand.u32 %v743, 4294901760
    %1337 = vmatpush1.msra.mxu0 %v1336
    %1338 = vmatprep.subr.mxu0 0.0
    %v1339 = vand.u32 %v744, 4294901760
    %1340 = vmatpush1.msra.mxu0 %v1339
    %1341 = vmatprep.subr.mxu0 0.0
    %v1342 = vand.u32 %v745, 4294901760
    %1343 = vmatpush1.msra.mxu0 %v1342
    %1344 = vmatprep.subr.mxu0 0.0
    %v1345 = vand.u32 %v746, 4294901760
    %1346 = vmatpush1.msra.mxu0 %v1345
    %1347 = vmatprep.subr.mxu0 0.0
    %v1348 = vand.u32 %v747, 4294901760
    %1349 = vmatpush1.msra.mxu0 %v1348
    %1350 = vmatprep.subr.mxu0 0.0
    %1351 = vmatpush1.msra.mxu0 0.0
    %1352 = vmatprep.subr.mxu0 0.0
    %1353 = vmatpush1.msra.mxu0 0.0
    %1354 = vmatprep.subr.mxu0 0.0
    %1355 = vmatpush1.msra.mxu0 0.0
    %1356 = vmatprep.subr.mxu0 0.0
    %1357 = vmatpush1.msra.mxu0 0.0
    %1358 = vmatprep.subr.mxu0 0.0
    %1359 = vmatpush1.msra.mxu0 0.0
    %1360 = vmatprep.subr.mxu0 0.0
    %1361 = vmatpush1.msra.mxu0 0.0
    %1362 = vmatprep.subr.mxu0 0.0
    %1363 = vmatpush1.msra.mxu0 0.0
    %1364 = vmatprep.subr.mxu0 0.0
    %1365 = vmatpush1.msra.mxu0 0.0
    %1366 = vmatprep.subr.mxu0 0.0
    %1367 = vmatpush1.msra.mxu0 0.0
    %1368 = vmatprep.subr.mxu0 0.0
    %1369 = vmatpush1.msra.mxu0 0.0
    %1370 = vmatprep.subr.mxu0 0.0
    %1371 = vmatpush1.msra.mxu0 0.0
    %1372 = vmatprep.subr.mxu0 0.0
    %1373 = vmatpush1.msra.mxu0 0.0
    %1374 = vmatprep.subr.mxu0 0.0
    %1375 = vmatpush1.msra.mxu0 0.0
    %1376 = vmatprep.subr.mxu0 0.0
    %1377 = vmatpush1.msra.mxu0 0.0
    %1378 = vmatprep.subr.mxu0 0.0
    %1379 = vmatpush1.msra.mxu0 0.0
    %1380 = vmatprep.subr.mxu0 0.0
    %1381 = vmatpush1.msra.mxu0 0.0
    %1382 = vmatprep.mubr.f32.mxu0 0.0
    %v1383 = vand.u32 %v730, 4294901760
    %1384 = vmatmul.mubr.f32.gmra.mrb[0].mxu0 %v1383
    %v1385 = vpop.f32.mrb[0].mxu0
    %v1386 = vadd.f32 %v1299, %v1385
    %v1387 = vpop.f32.mrb[0].mxu0
    %1388 = vdwg.mxu0
    %v1389 = vadd.f32 %v731, %v1386
    %1390 = vst [vmem:[#allocation2] sm:$0xff] %v1389
    // Predicated region
    $region38: #{tpu_custom_call.1} parent=1 // pred_check
      %p1391 = pneg %p60
    $region39: #{tpu_custom_call.1} parent=1 // pred_check_branch
      %1393 = sbr.rel (%p1391) target = $region41
    $region40: #{tpu_custom_call.1} parent=1 // pred_region
      %v1394 = vld [vmem:[#allocation2] sm:$0xff]
      %v1395 = vld [vmem:[%s4] sm:$0x1]
      %v1397 = vlaneseq
      %v1398 = vshrl.u32 %v1397, 7
      %v1399 = vsub.s32 0, %v1398
      %v1400 = vrot.slane %v1395, %v1399
      %v1402 = vadd.f32 %v1394, %v1400
      %v1403 = vmax.f32 %v1402, 0.0
      %1404 = vst [vmem:[#allocation9] sm:$0xff] %v1403
    $region41: #{tpu_custom_call.1} parent=1 // pred_fallthru
      _
    // Predicated region
    $region42: #{tpu_custom_call.1} parent=1 // pred_check
      _
    $region43: #{tpu_custom_call.1} parent=1 // pred_check_branch
      %1406 = sbr.rel (0) target = $region45
    $region44: #{tpu_custom_call.1} parent=1 // pred_region
      %s1408 = ssub.s32 128, 128
      %1409 = vsyncadd [#allocation5], %s1408
      %s1411 = sshll.u32 [#allocation9], 4
      %s1412 = int_to_ptr.vmem [resolvable:$true] %s1411
      %1414 = dma.vmem_to_hbm [thread:$0]  %s1412, 128, %s5, [#allocation5]
    $region45: #{tpu_custom_call.1} parent=1 // pred_fallthru
      _
    // Predicated region
    $region46: #{tpu_custom_call.1} parent=1 // pred_check
      _
    $region47: #{tpu_custom_call.1} parent=1 // pred_check_branch
      %1416 = sbr.rel (0) target = $region49
    $region48: #{tpu_custom_call.1} parent=1 // pred_region
      %1417 = dma.done [#allocation5], 128
    $region49: #{tpu_custom_call.1} parent=1 // pred_fallthru
      _
    %1418 = vsyncpa [#allocation4], 1
    %1419 = vsyncpa [#allocation7], 1
    %1420 = vsyncpa [#allocation5], 1

</llo_original>
